<compile_context>
chip_gen: v7x
topology: tpu7x:2x2x1
jax: 0.10.0
libtpu: 0.0.40
codegen_flags: <defaults>
</compile_context>

<pallas_src>
from functools import partial

import jax
import jax.numpy as jnp
from jax.experimental import pallas as pl
from jax.experimental.pallas import tpu as pltpu


def _round_up(x, m):
    return (x + m - 1) // m * m


def conv_bn_relu_kernel(x_ref, w_ref, scale_ref, shift_ref, o_ref, *,
                        tile_h, W, cin_p, cout_p):
    """One (batch, H-tile) grid step of fused 3x3 conv + folded BN + ReLU.

    x_ref     : (H+2, W+2, cin_p)   zero-padded bf16 input for this batch element
    w_ref     : (9*cin_p, cout_p)   bf16 weights, tap-major rows (k = kh*3 + kw)
    scale_ref : (1, cout_p)         f32 gamma / sqrt(running_var + eps)
    shift_ref : (1, cout_p)         f32 beta - running_mean * scale
    o_ref     : (tile_h, W, cout_p) f32 output tile
    """
    ht = pl.program_id(1)
    row0 = pl.multiple_of(ht * tile_h, tile_h)

    # Single halo'd slab load; the 9 taps are static offsets into it
    # (no per-tap strided re-loads from the ref).
    slab = x_ref[pl.ds(row0, tile_h + 2), :, :]            # (tile_h+2, W+2, cin_p) bf16

    m = tile_h * W
    taps = []
    for k in range(9):
        dy, dx = divmod(k, 3)
        taps.append(slab[dy:dy + tile_h, dx:dx + W, :].reshape(m, cin_p))
    patch = jnp.concatenate(taps, axis=-1)                 # (m, 9*cin_p) bf16, lane-dense

    # One deep MXU matmul (K = 9*cin_p), f32 accumulation.
    acc = jnp.dot(patch, w_ref[...], preferred_element_type=jnp.float32)   # (m, cout_p)

    # Folded BatchNorm (inference) + ReLU.
    y = acc * scale_ref[...] + shift_ref[...]
    y = jnp.maximum(y, 0.0)
    # TODO(synk): Dropout(p=0.2) is identity in eval mode; training-mode masking via
    #             pltpu.prng_seed / pltpu.prng_random_bits is not implemented here.
    o_ref[...] = y.reshape(tile_h, W, cout_p).astype(o_ref.dtype)


def convolution_forward(x_nchw, weight_oihw, gamma, beta, running_mean, running_var,
                        eps=1e-5, tile_h=8):
    """Forward pass of `Convolution` (inference mode). Input/output are NCHW like PyTorch."""
    N, Cin, H, W = x_nchw.shape
    Cout = weight_oihw.shape[0]
    if H % tile_h != 0:
        tile_h = H                            # fall back to a single H tile
    cin_p = _round_up(Cin, 128)
    cout_p = _round_up(Cout, 128)

    # NCHW -> NHWC, zero-pad spatially (padding=1), pad channels to lane width, cast bf16.
    # TODO(synk): the layout transpose + halo pad add an extra HBM pass over x; they could be
    #             folded into BlockSpec index_maps / boundary masking to cut input traffic.
    x_nhwc = jnp.transpose(x_nchw, (0, 2, 3, 1))
    x_pad = jnp.pad(x_nhwc, ((0, 0), (1, 1), (1, 1), (0, cin_p - Cin))).astype(jnp.bfloat16)

    # OIHW -> (kh, kw, Cin, Cout) -> pad channels -> (9*cin_p, cout_p), tap-major rows.
    w = jnp.transpose(weight_oihw, (2, 3, 1, 0))
    w = jnp.pad(w, ((0, 0), (0, 0), (0, cin_p - Cin), (0, cout_p - Cout)))
    w = w.reshape(9 * cin_p, cout_p).astype(jnp.bfloat16)

    # Fold BatchNorm running stats into a per-channel affine (f32).
    scale = (gamma / jnp.sqrt(running_var + eps)).astype(jnp.float32)
    shift = (beta - running_mean * scale).astype(jnp.float32)
    scale = jnp.pad(scale, (0, cout_p - Cout)).reshape(1, cout_p)
    shift = jnp.pad(shift, (0, cout_p - Cout)).reshape(1, cout_p)

    grid = (N, H // tile_h)

    flops = 2 * N * H * W * (9 * cin_p) * cout_p
    bytes_accessed = (x_pad.size * x_pad.dtype.itemsize
                      + w.size * w.dtype.itemsize
                      + scale.size * 4 + shift.size * 4
                      + N * H * W * cout_p * 4)

    out_nhwc = pl.pallas_call(
        partial(conv_bn_relu_kernel, tile_h=tile_h, W=W, cin_p=cin_p, cout_p=cout_p),
        out_shape=jax.ShapeDtypeStruct((N, H, W, cout_p), x_nchw.dtype),
        grid=grid,
        in_specs=[
            # Full padded image of one batch element; block index changes only with n,
            # so it is fetched once per batch element (halo handled in-kernel on H).
            pl.BlockSpec((None, H + 2, W + 2, cin_p), lambda n, h: (n, 0, 0, 0)),
            # Weights / BN affine: constant index maps -> stay resident across the grid.
            pl.BlockSpec((9 * cin_p, cout_p), lambda n, h: (0, 0)),
            pl.BlockSpec((1, cout_p), lambda n, h: (0, 0)),
            pl.BlockSpec((1, cout_p), lambda n, h: (0, 0)),
        ],
        out_specs=pl.BlockSpec((None, tile_h, W, cout_p), lambda n, h: (n, h, 0, 0)),
        compiler_params=pltpu.CompilerParams(
            dimension_semantics=("parallel", "parallel"),
            vmem_limit_bytes=32 * 1024 * 1024),
        cost_estimate=pl.CostEstimate(flops=flops, transcendentals=0,
                                      bytes_accessed=bytes_accessed),
    )(x_pad, w, scale, shift)

    # Drop channel padding, NHWC -> NCHW to match PyTorch output layout.
    return jnp.transpose(out_nhwc[..., :Cout], (0, 3, 1, 2))


def _reference_forward(x, w, gamma, beta, mean, var, eps=1e-5):
    """Pure-JAX reference (lax conv, bf16 operands / f32 accumulate like the kernel)."""
    y = jax.lax.conv_general_dilated(
        x.astype(jnp.bfloat16), w.astype(jnp.bfloat16),
        window_strides=(1, 1), padding=((1, 1), (1, 1)),
        dimension_numbers=("NCHW", "OIHW", "NCHW"),
        preferred_element_type=jnp.float32)
    scale = gamma / jnp.sqrt(var + eps)
    shift = beta - mean * scale
    y = y * scale[None, :, None, None] + shift[None, :, None, None]
    return jnp.maximum(y, 0.0)


if __name__ == "__main__":
    key = jax.random.PRNGKey(0)
    k_x, k_w = jax.random.split(key)

    # Small shapes consistent with the module.
    N, Cin, Cout, H, W = 2, 4, 8, 16, 16

    x = jax.random.normal(k_x, (N, Cin, H, W), dtype=jnp.float32)

    # Deterministic parameter init (synthetic, no checkpoint).
    weight = 0.1 * jax.random.normal(k_w, (Cout, Cin, 3, 3), dtype=jnp.float32)
    gamma = 1.0 + 0.05 * jnp.arange(Cout, dtype=jnp.float32)
    beta = 0.01 * jnp.arange(Cout, dtype=jnp.float32)
    running_mean = 0.02 * jnp.arange(Cout, dtype=jnp.float32)
    running_var = 1.0 + 0.03 * jnp.arange(Cout, dtype=jnp.float32)

    out = convolution_forward(x, weight, gamma, beta, running_mean, running_var)
    out = jax.block_until_ready(out)

    ref = _reference_forward(x, weight, gamma, beta, running_mean, running_var)
    assert out.shape == (N, Cout, H, W), out.shape
    max_err = float(jnp.max(jnp.abs(out - ref)))
    assert jnp.allclose(out, ref, atol=5e-3, rtol=5e-3), max_err

    print("KERNEL_OK")
</pallas_src>

<mosaic_0001>
module attributes {stable_mosaic.version = 11 : i64} {
  func.func @conv_bn_relu_kernel(%arg0: i32, %arg1: i32, %arg2: memref<1x18x18x128xbf16, #tpu.memory_space<vmem>>, %arg3: memref<1152x128xbf16, #tpu.memory_space<vmem>>, %arg4: memref<1x128xf32, #tpu.memory_space<vmem>>, %arg5: memref<1x128xf32, #tpu.memory_space<vmem>>, %arg6: memref<1x8x16x128xf32, #tpu.memory_space<vmem>>) attributes {dimension_semantics = [#tpu.dimension_semantics<parallel>, #tpu.dimension_semantics<parallel>], iteration_bounds = array<i64: 2, 2>, scalar_prefetch = 0 : i64, scratch_operands = 0 : i64, tpu.core_type = #tpu.core_type<tc>, window_params = [{transform_indices = @transform_0, window_bounds = array<i64: 1, 18, 18, 128>}, {pipeline_mode = #tpu.pipeline_mode<synchronous>, transform_indices = @transform_1, window_bounds = array<i64: 1152, 128>}, {pipeline_mode = #tpu.pipeline_mode<synchronous>, transform_indices = @transform_2, window_bounds = array<i64: 1, 128>}, {pipeline_mode = #tpu.pipeline_mode<synchronous>, transform_indices = @transform_3, window_bounds = array<i64: 1, 128>}, {transform_indices = @transform_4, window_bounds = array<i64: 1, 8, 16, 128>}]} {
    %c8_i32 = arith.constant 8 : i32
    %0 = arith.muli %arg1, %c8_i32 : i32
    %1 = tpu.assume_multiple %0, 8 : i32
    %c0 = arith.constant 0 : index
    %2 = arith.index_cast %1 : i32 to index
    %c0_0 = arith.constant 0 : index
    %c0_1 = arith.constant 0 : index
    %3 = vector.load %arg2[%c0, %2, %c0_0, %c0_1] : memref<1x18x18x128xbf16, #tpu.memory_space<vmem>>, vector<1x10x18x128xbf16>
    %4 = vector.shape_cast %3 : vector<1x10x18x128xbf16> to vector<10x18x128xbf16>
    %5 = vector.extract_strided_slice %4 {offsets = [0, 0, 0], sizes = [8, 16, 128], strides = [1, 1, 1]} : vector<10x18x128xbf16> to vector<8x16x128xbf16>
    %6 = vector.shape_cast %5 : vector<8x16x128xbf16> to vector<128x128xbf16>
    %7 = vector.extract_strided_slice %4 {offsets = [0, 1, 0], sizes = [8, 16, 128], strides = [1, 1, 1]} : vector<10x18x128xbf16> to vector<8x16x128xbf16>
    %8 = vector.shape_cast %7 : vector<8x16x128xbf16> to vector<128x128xbf16>
    %9 = vector.extract_strided_slice %4 {offsets = [0, 2, 0], sizes = [8, 16, 128], strides = [1, 1, 1]} : vector<10x18x128xbf16> to vector<8x16x128xbf16>
    %10 = vector.shape_cast %9 : vector<8x16x128xbf16> to vector<128x128xbf16>
    %11 = vector.extract_strided_slice %4 {offsets = [1, 0, 0], sizes = [8, 16, 128], strides = [1, 1, 1]} : vector<10x18x128xbf16> to vector<8x16x128xbf16>
    %12 = vector.shape_cast %11 : vector<8x16x128xbf16> to vector<128x128xbf16>
    %13 = vector.extract_strided_slice %4 {offsets = [1, 1, 0], sizes = [8, 16, 128], strides = [1, 1, 1]} : vector<10x18x128xbf16> to vector<8x16x128xbf16>
    %14 = vector.shape_cast %13 : vector<8x16x128xbf16> to vector<128x128xbf16>
    %15 = vector.extract_strided_slice %4 {offsets = [1, 2, 0], sizes = [8, 16, 128], strides = [1, 1, 1]} : vector<10x18x128xbf16> to vector<8x16x128xbf16>
    %16 = vector.shape_cast %15 : vector<8x16x128xbf16> to vector<128x128xbf16>
    %17 = vector.extract_strided_slice %4 {offsets = [2, 0, 0], sizes = [8, 16, 128], strides = [1, 1, 1]} : vector<10x18x128xbf16> to vector<8x16x128xbf16>
    %18 = vector.shape_cast %17 : vector<8x16x128xbf16> to vector<128x128xbf16>
    %19 = vector.extract_strided_slice %4 {offsets = [2, 1, 0], sizes = [8, 16, 128], strides = [1, 1, 1]} : vector<10x18x128xbf16> to vector<8x16x128xbf16>
    %20 = vector.shape_cast %19 : vector<8x16x128xbf16> to vector<128x128xbf16>
    %21 = vector.extract_strided_slice %4 {offsets = [2, 2, 0], sizes = [8, 16, 128], strides = [1, 1, 1]} : vector<10x18x128xbf16> to vector<8x16x128xbf16>
    %22 = vector.shape_cast %21 : vector<8x16x128xbf16> to vector<128x128xbf16>
    %23 = tpu.concatenate %6, %8, %10, %12, %14, %16, %18, %20, %22 in 1 : vector<128x128xbf16>, vector<128x128xbf16>, vector<128x128xbf16>, vector<128x128xbf16>, vector<128x128xbf16>, vector<128x128xbf16>, vector<128x128xbf16>, vector<128x128xbf16>, vector<128x128xbf16> -> vector<128x1152xbf16>
    %c0_2 = arith.constant 0 : index
    %c0_3 = arith.constant 0 : index
    %24 = vector.load %arg3[%c0_2, %c0_3] : memref<1152x128xbf16, #tpu.memory_space<vmem>>, vector<1152x128xbf16>
    %cst = arith.constant dense<0.000000e+00> : vector<128x128xf32>
    %25 = tpu.matmul %23, %24, %cst {dimension_numbers = #tpu.dot_dimension_numbers<[1], [0], [0], [1], [0, 0, 1, 1], [], []>} : vector<128x1152xbf16>, vector<1152x128xbf16>, vector<128x128xf32> -> vector<128x128xf32>
    %c0_4 = arith.constant 0 : index
    %c0_5 = arith.constant 0 : index
    %26 = vector.load %arg4[%c0_4, %c0_5] : memref<1x128xf32, #tpu.memory_space<vmem>>, vector<1x128xf32>
    %27 = vector.broadcast %26 : vector<1x128xf32> to vector<128x128xf32>
    %28 = arith.mulf %25, %27 : vector<128x128xf32>
    %c0_6 = arith.constant 0 : index
    %c0_7 = arith.constant 0 : index
    %29 = vector.load %arg5[%c0_6, %c0_7] : memref<1x128xf32, #tpu.memory_space<vmem>>, vector<1x128xf32>
    %30 = vector.broadcast %29 : vector<1x128xf32> to vector<128x128xf32>
    %31 = arith.addf %28, %30 : vector<128x128xf32>
    %cst_8 = arith.constant 0.000000e+00 : f32
    %32 = vector.broadcast %cst_8 : f32 to vector<128x128xf32>
    %33 = arith.maximumf %31, %32 : vector<128x128xf32>
    %34 = vector.shape_cast %33 : vector<128x128xf32> to vector<8x16x128xf32>
    %c0_9 = arith.constant 0 : index
    %c0_10 = arith.constant 0 : index
    %c0_11 = arith.constant 0 : index
    %c0_12 = arith.constant 0 : index
    %35 = vector.load %arg6[%c0_9, %c0_10, %c0_11, %c0_12] : memref<1x8x16x128xf32, #tpu.memory_space<vmem>>, vector<1x8x16x128xf32>
    %36 = vector.shape_cast %35 : vector<1x8x16x128xf32> to vector<8x16x128xf32>
    %37 = vector.shape_cast %34 : vector<8x16x128xf32> to vector<1x8x16x128xf32>
    tpu.vector_store %arg6[%c0_9, %c0_10, %c0_11, %c0_12], %37 {strides = array<i32>} : memref<1x8x16x128xf32, #tpu.memory_space<vmem>>, vector<1x8x16x128xf32>,
    return
  }
  func.func @transform_0(%arg0: i32, %arg1: i32) -> (i32, i32, i32, i32) {
    %c0_i32 = arith.constant 0 : i32
    %c0_i32_0 = arith.constant 0 : i32
    %c0_i32_1 = arith.constant 0 : i32
    %c0_i32_2 = arith.constant 0 : i32
    return %arg0, %c0_i32, %c0_i32_0, %c0_i32_1 : i32, i32, i32, i32
  }
  func.func @transform_1(%arg0: i32, %arg1: i32) -> (i32, i32) {
    %c0_i32 = arith.constant 0 : i32
    %c0_i32_0 = arith.constant 0 : i32
    %c0_i32_1 = arith.constant 0 : i32
    return %c0_i32, %c0_i32_0 : i32, i32
  }
  func.func @transform_2(%arg0: i32, %arg1: i32) -> (i32, i32) {
    %c0_i32 = arith.constant 0 : i32
    %c0_i32_0 = arith.constant 0 : i32
    %c0_i32_1 = arith.constant 0 : i32
    return %c0_i32, %c0_i32_0 : i32, i32
  }
  func.func @transform_3(%arg0: i32, %arg1: i32) -> (i32, i32) {
    %c0_i32 = arith.constant 0 : i32
    %c0_i32_0 = arith.constant 0 : i32
    %c0_i32_1 = arith.constant 0 : i32
    return %c0_i32, %c0_i32_0 : i32, i32
  }
  func.func @transform_4(%arg0: i32, %arg1: i32) -> (i32, i32, i32, i32) {
    %c0_i32 = arith.constant 0 : i32
    %c0_i32_0 = arith.constant 0 : i32
    %c0_i32_1 = arith.constant 0 : i32
    return %arg0, %arg1, %c0_i32, %c0_i32_0 : i32, i32, i32, i32
  }
}

</mosaic_0001>

<llo_original>
// kernel: tpu_custom_call.1
$region0: #{tpu_custom_call.1}
  #allocation0 [shape = 'u32[]', space=smem, size = 0x4, offset = 0x4, fixed_abs, tag = 'smem constant byte address 0x4 - core index']
  #allocation1 [shape = 'u32[144,128]{1,0:T(1,128)}', space=vmem, size = 0x12000, scoped, tag = 'internal scratch']
  %s0 = inlined_call_operand.vmem [shape: bf16[2,18,18,128], index: 0, kind: input, shape index: {}]
  %s1 = inlined_call_operand.vmem [shape: bf16[1152,128], index: 1, kind: input, shape index: {}]
  %s2 = inlined_call_operand.vmem [shape: f32[1,128], index: 2, kind: input, shape index: {}]
  %s3 = inlined_call_operand.vmem [shape: f32[1,128], index: 3, kind: input, shape index: {}]
  %s4 = inlined_call_operand.hbm [shape: f32[2,16,16,128], index: 4, kind: output, shape index: {}]
  %s5 = sld [smem:[#allocation0]]
  $region49: #{tpu_custom_call.1} parent=0
    _
  %s7 = ssub.s32 1, %s5
  %s8 = scalar_select 0, %s7, %s5
  $region1: #{tpu_custom_call.1} parent=0
    #allocation2 [shape = 'u8[131072]{0}', space=vmem, size = 0x20000, scoped, tag = 'output window, operand 0']
    #allocation3 [shape = 's32[2]{0}', space=sflag, size = 0x8, scoped, tag = 'scoped memory for tpu_custom_call.1']
    %9 = vsyncpa [#allocation3], 0
    %s10 = scalar_lea.sflag [#allocation3], 1
    %11 = vsyncpa %s10, 0
    loop: start=0, step=1, limit=6
    $region2: #{tpu_custom_call.1} parent=1 // loop_pre_header
      _
    $region3: #{tpu_custom_call.1} parent=1 // loop_header
      %s13 = sphi 0, %s17
      %p14 = scmp.ge.s32.totalorder %s13, 6
      %s20 = sphi 0, %s32
      %s21 = sphi 0, %s28
      %s22 = sphi 0, %s20
      %s23 = sphi 0, %s21
      %s24 = sphi 0, %s22
      %s25 = sphi 0, %s23
      %s35 = sphi 0, %s37
      %s38 = sphi 0, %s35
      %s39 = sphi 0, %s38
      %s55 = sphi 0, %s39
      %s59 = sphi 0, %s59
      %s61 = sphi 0, %s59
      %s62 = sphi 0, %s61
      %s76 = sphi 0, %s62
      %s80 = sphi 0, %s80
      %s82 = sphi 0, %s80
      %s83 = sphi 0, %s82
      %s97 = sphi 0, %s83
      %s101 = sphi 0, %s101
      %s103 = sphi 0, %s101
      %s104 = sphi 0, %s103
      %s118 = sphi 0, %s104
      %s126 = sphi 0, %s128
      %s129 = sphi 0, %s126
      %s130 = sphi 0, %s129
      %s146 = sphi 0, %s130
    $region4: #{tpu_custom_call.1} parent=1 // loop_header_branch
      %16 = sbr.rel (%p14) target = $region8
    $region5: #{tpu_custom_call.1} parent=1 // loop_body
      %s18 = ssub.s32 %s13, 1
      %s19 = ssub.s32 %s13, 2
      %s26 = sadd.s32 1, %s21
      %p27 = scmp.ge.s32.totalorder %s26, 2
      %s28 = scalar_select %p27, 0, %s26
      %s29 = sadd.s32 1, %s20
      %s30 = scalar_select %p27, %s29, %s20
      %p31 = scmp.ge.s32.totalorder %s30, 2
      %s32 = scalar_select %p31, 0, %s30
      %s33 = ssub.s32 %s20, %s32
      %p34 = scmp.eq.s32.totalorder %s33, 0
      %s36 = sadd.s32 %s35, 1
      %s37 = scalar_select %p34, %s35, %s36
      %p40 = pneg %p34
      %p41 = scmp.eq.s32.totalorder %s13, 3
      %p42 = por %p40, %p41
      %p43 = scmp.ne.s32.totalorder %s35, %s38
      %p44 = scmp.eq.s32.totalorder %s13, 0
      %p45 = por %p43, %p44
      %p46 = scmp.ne.s32.totalorder %s35, %s38
      %p47 = scmp.eq.s32.totalorder %s18, 3
      %p48 = por %p46, %p47
      %p49 = scmp.ne.s32.totalorder %s38, %s39
      %p50 = scmp.eq.s32.totalorder %s18, 0
      %p51 = por %p49, %p50
      %p52 = scmp.ne.s32.totalorder %s38, %s39
      %p53 = scmp.eq.s32.totalorder %s19, 3
      %p54 = por %p52, %p53
      %p56 = scmp.ne.s32.totalorder %s39, %s55
      %p57 = scmp.eq.s32.totalorder %s19, 0
      %p58 = por %p56, %p57
      %s60 = sadd.s32 %s59, 1
      %p63 = scmp.eq.s32.totalorder %s13, 3
      %p64 = scmp.ne.s32.totalorder %s59, %s61
      %p65 = scmp.eq.s32.totalorder %s13, 0
      %p66 = por %p64, %p65
      %p67 = scmp.ne.s32.totalorder %s59, %s61
      %p68 = scmp.eq.s32.totalorder %s18, 3
      %p69 = por %p67, %p68
      %p70 = scmp.ne.s32.totalorder %s61, %s62
      %p71 = scmp.eq.s32.totalorder %s18, 0
      %p72 = por %p70, %p71
      %p73 = scmp.ne.s32.totalorder %s61, %s62
      %p74 = scmp.eq.s32.totalorder %s19, 3
      %p75 = por %p73, %p74
      %p77 = scmp.ne.s32.totalorder %s62, %s76
      %p78 = scmp.eq.s32.totalorder %s19, 0
      %p79 = por %p77, %p78
      %s81 = sadd.s32 %s80, 1
      %p84 = scmp.eq.s32.totalorder %s13, 3
      %p85 = scmp.ne.s32.totalorder %s80, %s82
      %p86 = scmp.eq.s32.totalorder %s13, 0
      %p87 = por %p85, %p86
      %p88 = scmp.ne.s32.totalorder %s80, %s82
      %p89 = scmp.eq.s32.totalorder %s18, 3
      %p90 = por %p88, %p89
      %p91 = scmp.ne.s32.totalorder %s82, %s83
      %p92 = scmp.eq.s32.totalorder %s18, 0
      %p93 = por %p91, %p92
      %p94 = scmp.ne.s32.totalorder %s82, %s83
      %p95 = scmp.eq.s32.totalorder %s19, 3
      %p96 = por %p94, %p95
      %p98 = scmp.ne.s32.totalorder %s83, %s97
      %p99 = scmp.eq.s32.totalorder %s19, 0
      %p100 = por %p98, %p99
      %s102 = sadd.s32 %s101, 1
      %p105 = scmp.eq.s32.totalorder %s13, 3
      %p106 = scmp.ne.s32.totalorder %s101, %s103
      %p107 = scmp.eq.s32.totalorder %s13, 0
      %p108 = por %p106, %p107
      %p109 = scmp.ne.s32.totalorder %s101, %s103
      %p110 = scmp.eq.s32.totalorder %s18, 3
      %p111 = por %p109, %p110
      %p112 = scmp.ne.s32.totalorder %s103, %s104
      %p113 = scmp.eq.s32.totalorder %s18, 0
      %p114 = por %p112, %p113
      %p115 = scmp.ne.s32.totalorder %s103, %s104
      %p116 = scmp.eq.s32.totalorder %s19, 3
      %p117 = por %p115, %p116
      %p119 = scmp.ne.s32.totalorder %s104, %s118
      %p120 = scmp.eq.s32.totalorder %s19, 0
      %p121 = por %p119, %p120
      %s122 = ssub.s32 %s20, %s32
      %s123 = ssub.s32 %s21, %s28
      %s124 = sor.u32 %s122, %s123
      %p125 = scmp.eq.s32.totalorder %s124, 0
      %s127 = sadd.s32 %s126, 1
      %s128 = scalar_select %p125, %s126, %s127
      %p131 = pneg %p125
      %p132 = scmp.eq.s32.totalorder %s13, 3
      %p133 = por %p131, %p132
      %p134 = scmp.ne.s32.totalorder %s126, %s129
      %p135 = scmp.eq.s32.totalorder %s13, 0
      %p136 = por %p134, %p135
      %p137 = scmp.ne.s32.totalorder %s126, %s129
      %p138 = scmp.eq.s32.totalorder %s18, 3
      %p139 = por %p137, %p138
      %p140 = scmp.ne.s32.totalorder %s129, %s130
      %p141 = scmp.eq.s32.totalorder %s18, 0
      %p142 = por %p140, %p141
      %p143 = scmp.ne.s32.totalorder %s129, %s130
      %p144 = scmp.eq.s32.totalorder %s19, 3
      %p145 = por %p143, %p144
      %p147 = scmp.ne.s32.totalorder %s130, %s146
      %p148 = scmp.eq.s32.totalorder %s19, 0
      %p149 = por %p147, %p148
      %p150 = scmp.le.s32.totalorder 1, %s13
      %p151 = scmp.lt.s32.totalorder %s13, 5
      %p152 = pnand %p150, %p151
      %p153 = pneg %p152
      // Predicated region
      $region9: #{tpu_custom_call.1} parent=5 // pred_check
        _
      $region10: #{tpu_custom_call.1} parent=5 // pred_check_branch
        %155 = sbr.rel (%p152) target = $region12
      $region11: #{tpu_custom_call.1} parent=5 // pred_region
        %s156 = ssub.s32 %s13, 1
        // Predicated region
        $region13: #{tpu_custom_call.1} parent=11 // pred_check
          %p157 = pneg %p72
        $region14: #{tpu_custom_call.1} parent=11 // pred_check_branch
          %159 = sbr.rel (%p157) target = $region16
        $region15: #{tpu_custom_call.1} parent=11 // pred_region
          _
        $region16: #{tpu_custom_call.1} parent=11 // pred_fallthru
          _
        // Predicated region
        $region17: #{tpu_custom_call.1} parent=11 // pred_check
          %p160 = pneg %p93
        $region18: #{tpu_custom_call.1} parent=11 // pred_check_branch
          %162 = sbr.rel (%p160) target = $region20
        $region19: #{tpu_custom_call.1} parent=11 // pred_region
          _
        $region20: #{tpu_custom_call.1} parent=11 // pred_fallthru
          _
        // Predicated region
        $region21: #{tpu_custom_call.1} parent=11 // pred_check
          %p163 = pneg %p114
        $region22: #{tpu_custom_call.1} parent=11 // pred_check_branch
          %165 = sbr.rel (%p163) target = $region24
        $region23: #{tpu_custom_call.1} parent=11 // pred_region
          _
        $region24: #{tpu_custom_call.1} parent=11 // pred_fallthru
          _
      $region12: #{tpu_custom_call.1} parent=5 // pred_fallthru
        _
      %p166 = scmp.lt.s32.totalorder %s13, 4
      // Predicated region
      $region25: #{tpu_custom_call.1} parent=5 // pred_check
        %p167 = pneg %p166
      $region26: #{tpu_custom_call.1} parent=5 // pred_check_branch
        %169 = sbr.rel (%p167) target = $region28
      $region27: #{tpu_custom_call.1} parent=5 // pred_region
        // Predicated region
        $region29: #{tpu_custom_call.1} parent=27 // pred_check
          %p170 = pneg %p45
        $region30: #{tpu_custom_call.1} parent=27 // pred_check_branch
          %172 = sbr.rel (%p170) target = $region32
        $region31: #{tpu_custom_call.1} parent=27 // pred_region
          %p173 = scmp.lt.s32.totalorder %s20, 1
          %s174 = scalar_select %p173, %s20, 1
          %s175 = smul.addr %s174, 54
          %s176 = smul.addr %s175, 4
          %s177 = scalar_lea.vmem %s0, %s176
        $region32: #{tpu_custom_call.1} parent=27 // pred_fallthru
          _
      $region28: #{tpu_custom_call.1} parent=5 // pred_fallthru
        _
      %p178 = scmp.le.s32.totalorder 1, %s13
      %p179 = scmp.lt.s32.totalorder %s13, 5
      %p180 = pnand %p178, %p179
      %p181 = pneg %p180
      // Predicated region
      $region33: #{tpu_custom_call.1} parent=5 // pred_check
        _
      $region34: #{tpu_custom_call.1} parent=5 // pred_check_branch
        %183 = sbr.rel (%p180) target = $region36
      $region35: #{tpu_custom_call.1} parent=5 // pred_region
        %s184 = ssub.s32 %s13, 1
        %p185 = scmp.lt.s32.totalorder %s22, 1
        %s186 = scalar_select %p185, %s22, 1
        %s187 = smul.addr %s186, 54
        %s188 = smul.addr %s187, 4
        %s189 = scalar_lea.vmem %s0, %s188
        %p190 = pneg %p51
        %p191 = pneg %p48
        %p192 = pneg %p72
        %p193 = pneg %p69
        %p194 = pneg %p93
        %p195 = pneg %p90
        %p196 = pneg %p114
        %p197 = pneg %p111
        %p198 = pneg %p142
        %p199 = pneg %p139
        %s200 = sand.u32 %s129, 1
        %s201 = scalar_lea.sflag [#allocation3], %s200
        %s202 = sand.u32 %s129, 1
        %s203 = smul.addr %s202, 128
        %s204 = scalar_lea.vmem [#allocation2], %s203
        %p205 = scmp.lt.s32.totalorder %s22, 1
        %s206 = scalar_select %p205, %s22, 1
        %s207 = smul.addr %s206, 54
        %s208 = smul.addr %s207, 4
        %s209 = scalar_lea.vmem %s0, %s208
        %s210 = smul.u32 8, %s23
        %s212 = smul.u32 %s23, 8
        %s213 = smul.u32 %s212, 3
        %s214 = smul.addr %s213, 4
        %s215 = scalar_lea.vmem %s209, %s214
        %v216 = vld [vmem:[%s215] sm:$0xf]
        %v217 = vld [vmem:[%s215 + $0x4] sm:$0xf]
        %v218 = vld [vmem:[%s215 + $0x8] sm:$0x1]
        %v219 = vld [vmem:[%s215 + $0xc] sm:$0xf]
        %v220 = vld [vmem:[%s215 + $0x10] sm:$0xf]
        %v221 = vld [vmem:[%s215 + $0x14] sm:$0x1]
        %v222 = vld [vmem:[%s215 + $0x18] sm:$0xf]
        %v223 = vld [vmem:[%s215 + $0x1c] sm:$0xf]
        %v224 = vld [vmem:[%s215 + $0x20] sm:$0x1]
        %v225 = vld [vmem:[%s215 + $0x24] sm:$0xf]
        %v226 = vld [vmem:[%s215 + $0x28] sm:$0xf]
        %v227 = vld [vmem:[%s215 + $0x2c] sm:$0x1]
        %v228 = vld [vmem:[%s215 + $0x30] sm:$0xf]
        %v229 = vld [vmem:[%s215 + $0x34] sm:$0xf]
        %v230 = vld [vmem:[%s215 + $0x38] sm:$0x1]
        %v231 = vld [vmem:[%s215 + $0x3c] sm:$0xf]
        %v232 = vld [vmem:[%s215 + $0x40] sm:$0xf]
        %v233 = vld [vmem:[%s215 + $0x44] sm:$0x1]
        %v234 = vld [vmem:[%s215 + $0x48] sm:$0xf]
        %v235 = vld [vmem:[%s215 + $0x4c] sm:$0xf]
        %v236 = vld [vmem:[%s215 + $0x50] sm:$0x1]
        %v237 = vld [vmem:[%s215 + $0x54] sm:$0xf]
        %v238 = vld [vmem:[%s215 + $0x58] sm:$0xf]
        %v239 = vld [vmem:[%s215 + $0x5c] sm:$0x1]
        %v240 = vld [vmem:[%s215 + $0x60] sm:$0xf]
        %v241 = vld [vmem:[%s215 + $0x64] sm:$0xf]
        %v242 = vld [vmem:[%s215 + $0x68] sm:$0x1]
        %v243 = vld [vmem:[%s215 + $0x6c] sm:$0xf]
        %v244 = vld [vmem:[%s215 + $0x70] sm:$0xf]
        %v245 = vld [vmem:[%s215 + $0x74] sm:$0x1]
        %vm246 = vsmask.f32 3328
        %vm247 = vsmask.f32 7440
        %vm248 = vmor %vm246, %vm247
        %v250 = vshrl.u32 %v216, 16
        %v252 = vrot.slane %v250, 4
        %v253 = vshll.u32 %v216, 16
        %v255 = vrot.slane %v253, 5
        %v256 = vor.u32 %v252, %v255
        %v257 = vrot.slane %v256, 4
        %v259 = vshll.u32 %v217, 16
        %v261 = vrot.slane %v259, 5
        %v262 = vsel %vm248, %v257, %v261
        %v263 = vshrl.u32 %v217, 16
        %v265 = vrot.slane %v263, 4
        %v266 = vor.u32 %v265, %v261
        %v267 = vrot.slane %v266, 4
        %v269 = vshll.u32 %v218, 16
        %v271 = vrot.slane %v269, 5
        %v272 = vsel %vm248, %v267, %v271
        %v274 = vshrl.u32 %v219, 16
        %v276 = vrot.slane %v274, 4
        %v277 = vshll.u32 %v219, 16
        %v279 = vrot.slane %v277, 5
        %v280 = vor.u32 %v276, %v279
        %v281 = vrot.slane %v280, 4
        %v283 = vshll.u32 %v220, 16
        %v285 = vrot.slane %v283, 5
        %v286 = vsel %vm248, %v281, %v285
        %v287 = vshrl.u32 %v220, 16
        %v289 = vrot.slane %v287, 4
        %v290 = vor.u32 %v289, %v285
        %v291 = vrot.slane %v290, 4
        %v293 = vshll.u32 %v221, 16
        %v295 = vrot.slane %v293, 5
        %v296 = vsel %vm248, %v291, %v295
        %v298 = vshrl.u32 %v222, 16
        %v300 = vrot.slane %v298, 4
        %v301 = vshll.u32 %v222, 16
        %v303 = vrot.slane %v301, 5
        %v304 = vor.u32 %v300, %v303
        %v305 = vrot.slane %v304, 4
        %v307 = vshll.u32 %v223, 16
        %v309 = vrot.slane %v307, 5
        %v310 = vsel %vm248, %v305, %v309
        %v311 = vshrl.u32 %v223, 16
        %v313 = vrot.slane %v311, 4
        %v314 = vor.u32 %v313, %v309
        %v315 = vrot.slane %v314, 4
        %v317 = vshll.u32 %v224, 16
        %v319 = vrot.slane %v317, 5
        %v320 = vsel %vm248, %v315, %v319
        %v322 = vshrl.u32 %v225, 16
        %v324 = vrot.slane %v322, 4
        %v325 = vshll.u32 %v225, 16
        %v327 = vrot.slane %v325, 5
        %v328 = vor.u32 %v324, %v327
        %v329 = vrot.slane %v328, 4
        %v331 = vshll.u32 %v226, 16
        %v333 = vrot.slane %v331, 5
        %v334 = vsel %vm248, %v329, %v333
        %v335 = vshrl.u32 %v226, 16
        %v337 = vrot.slane %v335, 4
        %v338 = vor.u32 %v337, %v333
        %v339 = vrot.slane %v338, 4
        %v341 = vshll.u32 %v227, 16
        %v343 = vrot.slane %v341, 5
        %v344 = vsel %vm248, %v339, %v343
        %v346 = vshrl.u32 %v228, 16
        %v348 = vrot.slane %v346, 4
        %v349 = vshll.u32 %v228, 16
        %v351 = vrot.slane %v349, 5
        %v352 = vor.u32 %v348, %v351
        %v353 = vrot.slane %v352, 4
        %v355 = vshll.u32 %v229, 16
        %v357 = vrot.slane %v355, 5
        %v358 = vsel %vm248, %v353, %v357
        %v359 = vshrl.u32 %v229, 16
        %v361 = vrot.slane %v359, 4
        %v362 = vor.u32 %v361, %v357
        %v363 = vrot.slane %v362, 4
        %v365 = vshll.u32 %v230, 16
        %v367 = vrot.slane %v365, 5
        %v368 = vsel %vm248, %v363, %v367
        %v370 = vshrl.u32 %v231, 16
        %v372 = vrot.slane %v370, 4
        %v373 = vshll.u32 %v231, 16
        %v375 = vrot.slane %v373, 5
        %v376 = vor.u32 %v372, %v375
        %v377 = vrot.slane %v376, 4
        %v379 = vshll.u32 %v232, 16
        %v381 = vrot.slane %v379, 5
        %v382 = vsel %vm248, %v377, %v381
        %v383 = vshrl.u32 %v232, 16
        %v385 = vrot.slane %v383, 4
        %v386 = vor.u32 %v385, %v381
        %v387 = vrot.slane %v386, 4
        %v389 = vshll.u32 %v233, 16
        %v391 = vrot.slane %v389, 5
        %v392 = vsel %vm248, %v387, %v391
        %v394 = vshrl.u32 %v234, 16
        %v396 = vrot.slane %v394, 4
        %v397 = vshll.u32 %v234, 16
        %v399 = vrot.slane %v397, 5
        %v400 = vor.u32 %v396, %v399
        %v401 = vrot.slane %v400, 4
        %v403 = vshll.u32 %v235, 16
        %v405 = vrot.slane %v403, 5
        %v406 = vsel %vm248, %v401, %v405
        %v407 = vshrl.u32 %v235, 16
        %v409 = vrot.slane %v407, 4
        %v410 = vor.u32 %v409, %v405
        %v411 = vrot.slane %v410, 4
        %v413 = vshll.u32 %v236, 16
        %v415 = vrot.slane %v413, 5
        %v416 = vsel %vm248, %v411, %v415
        %v418 = vshrl.u32 %v237, 16
        %v420 = vrot.slane %v418, 4
        %v421 = vshll.u32 %v237, 16
        %v423 = vrot.slane %v421, 5
        %v424 = vor.u32 %v420, %v423
        %v425 = vrot.slane %v424, 4
        %v427 = vshll.u32 %v238, 16
        %v429 = vrot.slane %v427, 5
        %v430 = vsel %vm248, %v425, %v429
        %v431 = vshrl.u32 %v238, 16
        %v433 = vrot.slane %v431, 4
        %v434 = vor.u32 %v433, %v429
        %v435 = vrot.slane %v434, 4
        %v437 = vshll.u32 %v239, 16
        %v439 = vrot.slane %v437, 5
        %v440 = vsel %vm248, %v435, %v439
        %vm465 = vcmask 1042432
        %vm466 = vcmask 1046532
        %vm467 = vmor %vm465, %vm466
        %v468 = vrot.slane %v216, 5
        %v469 = vrot.slane %v468, 4
        %v470 = vrot.slane %v217, 5
        %v471 = vsel %vm467, %v469, %v470
        %v472 = vrot.slane %v470, 4
        %v473 = vrot.slane %v218, 5
        %v474 = vsel %vm467, %v472, %v473
        %v475 = vrot.slane %v219, 5
        %v476 = vrot.slane %v475, 4
        %v477 = vrot.slane %v220, 5
        %v478 = vsel %vm467, %v476, %v477
        %v479 = vrot.slane %v477, 4
        %v480 = vrot.slane %v221, 5
        %v481 = vsel %vm467, %v479, %v480
        %v482 = vrot.slane %v222, 5
        %v483 = vrot.slane %v482, 4
        %v484 = vrot.slane %v223, 5
        %v485 = vsel %vm467, %v483, %v484
        %v486 = vrot.slane %v484, 4
        %v487 = vrot.slane %v224, 5
        %v488 = vsel %vm467, %v486, %v487
        %v489 = vrot.slane %v225, 5
        %v490 = vrot.slane %v489, 4
        %v491 = vrot.slane %v226, 5
        %v492 = vsel %vm467, %v490, %v491
        %v493 = vrot.slane %v491, 4
        %v494 = vrot.slane %v227, 5
        %v495 = vsel %vm467, %v493, %v494
        %v496 = vrot.slane %v228, 5
        %v497 = vrot.slane %v496, 4
        %v498 = vrot.slane %v229, 5
        %v499 = vsel %vm467, %v497, %v498
        %v500 = vrot.slane %v498, 4
        %v501 = vrot.slane %v230, 5
        %v502 = vsel %vm467, %v500, %v501
        %v503 = vrot.slane %v231, 5
        %v504 = vrot.slane %v503, 4
        %v505 = vrot.slane %v232, 5
        %v506 = vsel %vm467, %v504, %v505
        %v507 = vrot.slane %v505, 4
        %v508 = vrot.slane %v233, 5
        %v509 = vsel %vm467, %v507, %v508
        %v510 = vrot.slane %v234, 5
        %v511 = vrot.slane %v510, 4
        %v512 = vrot.slane %v235, 5
        %v513 = vsel %vm467, %v511, %v512
        %v514 = vrot.slane %v512, 4
        %v515 = vrot.slane %v236, 5
        %v516 = vsel %vm467, %v514, %v515
        %v517 = vrot.slane %v237, 5
        %v518 = vrot.slane %v517, 4
        %v519 = vrot.slane %v238, 5
        %v520 = vsel %vm467, %v518, %v519
        %v521 = vrot.slane %v519, 4
        %v522 = vrot.slane %v239, 5
        %v523 = vsel %vm467, %v521, %v522
        %v525 = vshrl.u32 %v240, 16
        %v527 = vrot.slane %v525, 4
        %v528 = vshll.u32 %v240, 16
        %v530 = vrot.slane %v528, 5
        %v531 = vor.u32 %v527, %v530
        %v532 = vrot.slane %v531, 4
        %v534 = vshll.u32 %v241, 16
        %v536 = vrot.slane %v534, 5
        %v537 = vsel %vm248, %v532, %v536
        %v538 = vshrl.u32 %v241, 16
        %v540 = vrot.slane %v538, 4
        %v541 = vor.u32 %v540, %v536
        %v542 = vrot.slane %v541, 4
        %v544 = vshll.u32 %v242, 16
        %v546 = vrot.slane %v544, 5
        %v547 = vsel %vm248, %v542, %v546
        %v551 = vrot.slane %v240, 5
        %v552 = vrot.slane %v551, 4
        %v553 = vrot.slane %v241, 5
        %v554 = vsel %vm467, %v552, %v553
        %v555 = vrot.slane %v553, 4
        %v556 = vrot.slane %v242, 5
        %v557 = vsel %vm467, %v555, %v556
        %v559 = vshrl.u32 %v243, 16
        %v561 = vrot.slane %v559, 4
        %v562 = vshll.u32 %v243, 16
        %v564 = vrot.slane %v562, 5
        %v565 = vor.u32 %v561, %v564
        %v566 = vrot.slane %v565, 4
        %v568 = vshll.u32 %v244, 16
        %v570 = vrot.slane %v568, 5
        %v571 = vsel %vm248, %v566, %v570
        %v572 = vshrl.u32 %v244, 16
        %v574 = vrot.slane %v572, 4
        %v575 = vor.u32 %v574, %v570
        %v576 = vrot.slane %v575, 4
        %v578 = vshll.u32 %v245, 16
        %v580 = vrot.slane %v578, 5
        %v581 = vsel %vm248, %v576, %v580
        %v585 = vrot.slane %v243, 5
        %v586 = vrot.slane %v585, 4
        %v587 = vrot.slane %v244, 5
        %v588 = vsel %vm467, %v586, %v587
        %v589 = vrot.slane %v587, 4
        %v590 = vrot.slane %v245, 5
        %v591 = vsel %vm467, %v589, %v590
        %v592 = vunpack.c.l.b16 %v216
        %v593 = vunpack.c.l.b16 %v217
        %v594 = vunpack.c.l.b16 %v219
        %v595 = vunpack.c.l.b16 %v220
        %v596 = vunpack.c.l.b16 %v222
        %v597 = vunpack.c.l.b16 %v223
        %v598 = vunpack.c.l.b16 %v225
        %v599 = vunpack.c.l.b16 %v226
        %v600 = vunpack.c.l.b16 %v228
        %v601 = vunpack.c.l.b16 %v229
        %v602 = vunpack.c.l.b16 %v231
        %v603 = vunpack.c.l.b16 %v232
        %v604 = vunpack.c.l.b16 %v234
        %v605 = vunpack.c.l.b16 %v235
        %v606 = vunpack.c.l.b16 %v237
        %v607 = vunpack.c.l.b16 %v238
        %v608 = vpack.c.b16 %v593, %v592
        %v609 = vpack.c.b16 %v595, %v594
        %v610 = vpack.c.b16 %v597, %v596
        %v611 = vpack.c.b16 %v599, %v598
        %v612 = vpack.c.b16 %v601, %v600
        %v613 = vpack.c.b16 %v603, %v602
        %v614 = vpack.c.b16 %v605, %v604
        %v615 = vpack.c.b16 %v607, %v606
        %v624 = vunpack.c.l.b16 %v262
        %v625 = vunpack.c.l.b16 %v272
        %v626 = vunpack.c.l.b16 %v286
        %v627 = vunpack.c.l.b16 %v296
        %v628 = vunpack.c.l.b16 %v310
        %v629 = vunpack.c.l.b16 %v320
        %v630 = vunpack.c.l.b16 %v334
        %v631 = vunpack.c.l.b16 %v344
        %v632 = vunpack.c.l.b16 %v358
        %v633 = vunpack.c.l.b16 %v368
        %v634 = vunpack.c.l.b16 %v382
        %v635 = vunpack.c.l.b16 %v392
        %v636 = vunpack.c.l.b16 %v406
        %v637 = vunpack.c.l.b16 %v416
        %v638 = vunpack.c.l.b16 %v430
        %v639 = vunpack.c.l.b16 %v440
        %v640 = vpack.c.b16 %v625, %v624
        %v641 = vpack.c.b16 %v627, %v626
        %v642 = vpack.c.b16 %v629, %v628
        %v643 = vpack.c.b16 %v631, %v630
        %v644 = vpack.c.b16 %v633, %v632
        %v645 = vpack.c.b16 %v635, %v634
        %v646 = vpack.c.b16 %v637, %v636
        %v647 = vpack.c.b16 %v639, %v638
        %v656 = vunpack.c.l.b16 %v471
        %v657 = vunpack.c.l.b16 %v474
        %v658 = vunpack.c.l.b16 %v478
        %v659 = vunpack.c.l.b16 %v481
        %v660 = vunpack.c.l.b16 %v485
        %v661 = vunpack.c.l.b16 %v488
        %v662 = vunpack.c.l.b16 %v492
        %v663 = vunpack.c.l.b16 %v495
        %v664 = vunpack.c.l.b16 %v499
        %v665 = vunpack.c.l.b16 %v502
        %v666 = vunpack.c.l.b16 %v506
        %v667 = vunpack.c.l.b16 %v509
        %v668 = vunpack.c.l.b16 %v513
        %v669 = vunpack.c.l.b16 %v516
        %v670 = vunpack.c.l.b16 %v520
        %v671 = vunpack.c.l.b16 %v523
        %v672 = vpack.c.b16 %v657, %v656
        %v673 = vpack.c.b16 %v659, %v658
        %v674 = vpack.c.b16 %v661, %v660
        %v675 = vpack.c.b16 %v663, %v662
        %v676 = vpack.c.b16 %v665, %v664
        %v677 = vpack.c.b16 %v667, %v666
        %v678 = vpack.c.b16 %v669, %v668
        %v679 = vpack.c.b16 %v671, %v670
        %v688 = vunpack.c.l.b16 %v240
        %v689 = vunpack.c.l.b16 %v241
        %v690 = vpack.c.b16 %v689, %v688
        %v692 = vunpack.c.l.b16 %v537
        %v693 = vunpack.c.l.b16 %v547
        %v694 = vpack.c.b16 %v693, %v692
        %v696 = vunpack.c.l.b16 %v554
        %v697 = vunpack.c.l.b16 %v557
        %v698 = vpack.c.b16 %v697, %v696
        %v700 = vunpack.c.l.b16 %v243
        %v701 = vunpack.c.l.b16 %v244
        %v702 = vpack.c.b16 %v701, %v700
        %v704 = vunpack.c.l.b16 %v571
        %v705 = vunpack.c.l.b16 %v581
        %v706 = vpack.c.b16 %v705, %v704
        %v708 = vunpack.c.l.b16 %v588
        %v709 = vunpack.c.l.b16 %v591
        %v710 = vpack.c.b16 %v709, %v708
        %v712 = vld [vmem:[%s1] sm:$0xf]
        %v713 = vld [vmem:[%s1 + $0x4] sm:$0xf]
        %v714 = vld [vmem:[%s1 + $0x8] sm:$0xf]
        %v715 = vld [vmem:[%s1 + $0xc] sm:$0xf]
        %v716 = vld [vmem:[%s1 + $0x10] sm:$0xf]
        %v717 = vld [vmem:[%s1 + $0x14] sm:$0xf]
        %v718 = vld [vmem:[%s1 + $0x18] sm:$0xf]
        %v719 = vld [vmem:[%s1 + $0x1c] sm:$0xf]
        %v720 = vld [vmem:[%s1 + $0x20] sm:$0xf]
        %v721 = vld [vmem:[%s1 + $0x24] sm:$0xf]
        %v722 = vld [vmem:[%s1 + $0x28] sm:$0xf]
        %v723 = vld [vmem:[%s1 + $0x2c] sm:$0xf]
        %v724 = vld [vmem:[%s1 + $0x30] sm:$0xf]
        %v725 = vld [vmem:[%s1 + $0x34] sm:$0xf]
        %v726 = vld [vmem:[%s1 + $0x38] sm:$0xf]
        %v727 = vld [vmem:[%s1 + $0x3c] sm:$0xf]
        %v728 = vld [vmem:[%s1 + $0x40] sm:$0xf]
        %v729 = vld [vmem:[%s1 + $0x44] sm:$0xf]
        %v730 = vld [vmem:[%s1 + $0x48] sm:$0xf]
        %v731 = vld [vmem:[%s1 + $0x4c] sm:$0xf]
        %v732 = vld [vmem:[%s1 + $0x50] sm:$0xf]
        %v733 = vld [vmem:[%s1 + $0x54] sm:$0xf]
        %v734 = vld [vmem:[%s1 + $0x58] sm:$0xf]
        %v735 = vld [vmem:[%s1 + $0x5c] sm:$0xf]
        %v736 = vld [vmem:[%s1 + $0x60] sm:$0xf]
        %v737 = vld [vmem:[%s1 + $0x64] sm:$0xf]
        %v738 = vld [vmem:[%s1 + $0x68] sm:$0xf]
        %v739 = vld [vmem:[%s1 + $0x6c] sm:$0xf]
        %v740 = vld [vmem:[%s1 + $0x70] sm:$0xf]
        %v741 = vld [vmem:[%s1 + $0x74] sm:$0xf]
        %v742 = vld [vmem:[%s1 + $0x78] sm:$0xf]
        %v743 = vld [vmem:[%s1 + $0x7c] sm:$0xf]
        %v744 = vld [vmem:[%s1 + $0x80] sm:$0xf]
        %v745 = vld [vmem:[%s1 + $0x84] sm:$0xf]
        %v746 = vld [vmem:[%s1 + $0x88] sm:$0xf]
        %v747 = vld [vmem:[%s1 + $0x8c] sm:$0xf]
        %v748 = vld [vmem:[%s1 + $0x90] sm:$0xf]
        %v749 = vld [vmem:[%s1 + $0x94] sm:$0xf]
        %v750 = vld [vmem:[%s1 + $0x98] sm:$0xf]
        %v751 = vld [vmem:[%s1 + $0x9c] sm:$0xf]
        %v752 = vld [vmem:[%s1 + $0xa0] sm:$0xf]
        %v753 = vld [vmem:[%s1 + $0xa4] sm:$0xf]
        %v754 = vld [vmem:[%s1 + $0xa8] sm:$0xf]
        %v755 = vld [vmem:[%s1 + $0xac] sm:$0xf]
        %v756 = vld [vmem:[%s1 + $0xb0] sm:$0xf]
        %v757 = vld [vmem:[%s1 + $0xb4] sm:$0xf]
        %v758 = vld [vmem:[%s1 + $0xb8] sm:$0xf]
        %v759 = vld [vmem:[%s1 + $0xbc] sm:$0xf]
        %v760 = vld [vmem:[%s1 + $0xc0] sm:$0xf]
        %v761 = vld [vmem:[%s1 + $0xc4] sm:$0xf]
        %v762 = vld [vmem:[%s1 + $0xc8] sm:$0xf]
        %v763 = vld [vmem:[%s1 + $0xcc] sm:$0xf]
        %v764 = vld [vmem:[%s1 + $0xd0] sm:$0xf]
        %v765 = vld [vmem:[%s1 + $0xd4] sm:$0xf]
        %v766 = vld [vmem:[%s1 + $0xd8] sm:$0xf]
        %v767 = vld [vmem:[%s1 + $0xdc] sm:$0xf]
        %v768 = vld [vmem:[%s1 + $0xe0] sm:$0xf]
        %v769 = vld [vmem:[%s1 + $0xe4] sm:$0xf]
        %v770 = vld [vmem:[%s1 + $0xe8] sm:$0xf]
        %v771 = vld [vmem:[%s1 + $0xec] sm:$0xf]
        %v772 = vld [vmem:[%s1 + $0xf0] sm:$0xf]
        %v773 = vld [vmem:[%s1 + $0xf4] sm:$0xf]
        %v774 = vld [vmem:[%s1 + $0xf8] sm:$0xf]
        %v775 = vld [vmem:[%s1 + $0xfc] sm:$0xf]
        %v776 = vld [vmem:[%s1 + $0x100] sm:$0xf]
        %v777 = vld [vmem:[%s1 + $0x104] sm:$0xf]
        %v778 = vld [vmem:[%s1 + $0x108] sm:$0xf]
        %v779 = vld [vmem:[%s1 + $0x10c] sm:$0xf]
        %v780 = vld [vmem:[%s1 + $0x110] sm:$0xf]
        %v781 = vld [vmem:[%s1 + $0x114] sm:$0xf]
        %v782 = vld [vmem:[%s1 + $0x118] sm:$0xf]
        %v783 = vld [vmem:[%s1 + $0x11c] sm:$0xf]
        %v784 = vld [vmem:[%s1 + $0x120] sm:$0xf]
        %v785 = vld [vmem:[%s1 + $0x124] sm:$0xf]
        %v786 = vld [vmem:[%s1 + $0x128] sm:$0xf]
        %v787 = vld [vmem:[%s1 + $0x12c] sm:$0xf]
        %v788 = vld [vmem:[%s1 + $0x130] sm:$0xf]
        %v789 = vld [vmem:[%s1 + $0x134] sm:$0xf]
        %v790 = vld [vmem:[%s1 + $0x138] sm:$0xf]
        %v791 = vld [vmem:[%s1 + $0x13c] sm:$0xf]
        %v792 = vld [vmem:[%s1 + $0x140] sm:$0xf]
        %v793 = vld [vmem:[%s1 + $0x144] sm:$0xf]
        %v794 = vld [vmem:[%s1 + $0x148] sm:$0xf]
        %v795 = vld [vmem:[%s1 + $0x14c] sm:$0xf]
        %v796 = vld [vmem:[%s1 + $0x150] sm:$0xf]
        %v797 = vld [vmem:[%s1 + $0x154] sm:$0xf]
        %v798 = vld [vmem:[%s1 + $0x158] sm:$0xf]
        %v799 = vld [vmem:[%s1 + $0x15c] sm:$0xf]
        %v800 = vld [vmem:[%s1 + $0x160] sm:$0xf]
        %v801 = vld [vmem:[%s1 + $0x164] sm:$0xf]
        %v802 = vld [vmem:[%s1 + $0x168] sm:$0xf]
        %v803 = vld [vmem:[%s1 + $0x16c] sm:$0xf]
        %v804 = vld [vmem:[%s1 + $0x170] sm:$0xf]
        %v805 = vld [vmem:[%s1 + $0x174] sm:$0xf]
        %v806 = vld [vmem:[%s1 + $0x178] sm:$0xf]
        %v807 = vld [vmem:[%s1 + $0x17c] sm:$0xf]
        %v808 = vld [vmem:[%s1 + $0x180] sm:$0xf]
        %v809 = vld [vmem:[%s1 + $0x184] sm:$0xf]
        %v810 = vld [vmem:[%s1 + $0x188] sm:$0xf]
        %v811 = vld [vmem:[%s1 + $0x18c] sm:$0xf]
        %v812 = vld [vmem:[%s1 + $0x190] sm:$0xf]
        %v813 = vld [vmem:[%s1 + $0x194] sm:$0xf]
        %v814 = vld [vmem:[%s1 + $0x198] sm:$0xf]
        %v815 = vld [vmem:[%s1 + $0x19c] sm:$0xf]
        %v816 = vld [vmem:[%s1 + $0x1a0] sm:$0xf]
        %v817 = vld [vmem:[%s1 + $0x1a4] sm:$0xf]
        %v818 = vld [vmem:[%s1 + $0x1a8] sm:$0xf]
        %v819 = vld [vmem:[%s1 + $0x1ac] sm:$0xf]
        %v820 = vld [vmem:[%s1 + $0x1b0] sm:$0xf]
        %v821 = vld [vmem:[%s1 + $0x1b4] sm:$0xf]
        %v822 = vld [vmem:[%s1 + $0x1b8] sm:$0xf]
        %v823 = vld [vmem:[%s1 + $0x1bc] sm:$0xf]
        %v824 = vld [vmem:[%s1 + $0x1c0] sm:$0xf]
        %v825 = vld [vmem:[%s1 + $0x1c4] sm:$0xf]
        %v826 = vld [vmem:[%s1 + $0x1c8] sm:$0xf]
        %v827 = vld [vmem:[%s1 + $0x1cc] sm:$0xf]
        %v828 = vld [vmem:[%s1 + $0x1d0] sm:$0xf]
        %v829 = vld [vmem:[%s1 + $0x1d4] sm:$0xf]
        %v830 = vld [vmem:[%s1 + $0x1d8] sm:$0xf]
        %v831 = vld [vmem:[%s1 + $0x1dc] sm:$0xf]
        %v832 = vld [vmem:[%s1 + $0x1e0] sm:$0xf]
        %v833 = vld [vmem:[%s1 + $0x1e4] sm:$0xf]
        %v834 = vld [vmem:[%s1 + $0x1e8] sm:$0xf]
        %v835 = vld [vmem:[%s1 + $0x1ec] sm:$0xf]
        %v836 = vld [vmem:[%s1 + $0x1f0] sm:$0xf]
        %v837 = vld [vmem:[%s1 + $0x1f4] sm:$0xf]
        %v838 = vld [vmem:[%s1 + $0x1f8] sm:$0xf]
        %v839 = vld [vmem:[%s1 + $0x1fc] sm:$0xf]
        %v840 = vld [vmem:[%s1 + $0x200] sm:$0xf]
        %v841 = vld [vmem:[%s1 + $0x204] sm:$0xf]
        %v842 = vld [vmem:[%s1 + $0x208] sm:$0xf]
        %v843 = vld [vmem:[%s1 + $0x20c] sm:$0xf]
        %v844 = vld [vmem:[%s1 + $0x210] sm:$0xf]
        %v845 = vld [vmem:[%s1 + $0x214] sm:$0xf]
        %v846 = vld [vmem:[%s1 + $0x218] sm:$0xf]
        %v847 = vld [vmem:[%s1 + $0x21c] sm:$0xf]
        %v848 = vld [vmem:[%s1 + $0x220] sm:$0xf]
        %v849 = vld [vmem:[%s1 + $0x224] sm:$0xf]
        %v850 = vld [vmem:[%s1 + $0x228] sm:$0xf]
        %v851 = vld [vmem:[%s1 + $0x22c] sm:$0xf]
        %v852 = vld [vmem:[%s1 + $0x230] sm:$0xf]
        %v853 = vld [vmem:[%s1 + $0x234] sm:$0xf]
        %v854 = vld [vmem:[%s1 + $0x238] sm:$0xf]
        %v855 = vld [vmem:[%s1 + $0x23c] sm:$0xf]
        %v1000 = vunpack.c.l.b16 %v712
        %v1001 = vunpack.c.l.b16 %v713
        %v1002 = vunpack.c.l.b16 %v714
        %v1003 = vunpack.c.l.b16 %v715
        %v1004 = vunpack.c.l.b16 %v716
        %v1005 = vunpack.c.l.b16 %v717
        %v1006 = vunpack.c.l.b16 %v718
        %v1007 = vunpack.c.l.b16 %v719
        %v1008 = vunpack.c.l.b16 %v720
        %v1009 = vunpack.c.l.b16 %v721
        %v1010 = vunpack.c.l.b16 %v722
        %v1011 = vunpack.c.l.b16 %v723
        %v1012 = vunpack.c.l.b16 %v724
        %v1013 = vunpack.c.l.b16 %v725
        %v1014 = vunpack.c.l.b16 %v726
        %v1015 = vunpack.c.l.b16 %v727
        %v1016 = vunpack.c.l.b16 %v728
        %v1017 = vunpack.c.l.b16 %v729
        %v1018 = vunpack.c.l.b16 %v730
        %v1019 = vunpack.c.l.b16 %v731
        %v1020 = vunpack.c.l.b16 %v732
        %v1021 = vunpack.c.l.b16 %v733
        %v1022 = vunpack.c.l.b16 %v734
        %v1023 = vunpack.c.l.b16 %v735
        %v1024 = vunpack.c.l.b16 %v736
        %v1025 = vunpack.c.l.b16 %v737
        %v1026 = vunpack.c.l.b16 %v738
        %v1027 = vunpack.c.l.b16 %v739
        %v1028 = vunpack.c.l.b16 %v740
        %v1029 = vunpack.c.l.b16 %v741
        %v1030 = vunpack.c.l.b16 %v742
        %v1031 = vunpack.c.l.b16 %v743
        %v1032 = vunpack.c.l.b16 %v744
        %v1033 = vunpack.c.l.b16 %v745
        %v1034 = vunpack.c.l.b16 %v746
        %v1035 = vunpack.c.l.b16 %v747
        %v1036 = vunpack.c.l.b16 %v748
        %v1037 = vunpack.c.l.b16 %v749
        %v1038 = vunpack.c.l.b16 %v750
        %v1039 = vunpack.c.l.b16 %v751
        %v1040 = vunpack.c.l.b16 %v752
        %v1041 = vunpack.c.l.b16 %v753
        %v1042 = vunpack.c.l.b16 %v754
        %v1043 = vunpack.c.l.b16 %v755
        %v1044 = vunpack.c.l.b16 %v756
        %v1045 = vunpack.c.l.b16 %v757
        %v1046 = vunpack.c.l.b16 %v758
        %v1047 = vunpack.c.l.b16 %v759
        %v1048 = vunpack.c.l.b16 %v760
        %v1049 = vunpack.c.l.b16 %v761
        %v1050 = vunpack.c.l.b16 %v762
        %v1051 = vunpack.c.l.b16 %v763
        %v1052 = vunpack.c.l.b16 %v764
        %v1053 = vunpack.c.l.b16 %v765
        %v1054 = vunpack.c.l.b16 %v766
        %v1055 = vunpack.c.l.b16 %v767
        %v1056 = vunpack.c.l.b16 %v768
        %v1057 = vunpack.c.l.b16 %v769
        %v1058 = vunpack.c.l.b16 %v770
        %v1059 = vunpack.c.l.b16 %v771
        %v1060 = vunpack.c.l.b16 %v772
        %v1061 = vunpack.c.l.b16 %v773
        %v1062 = vunpack.c.l.b16 %v774
        %v1063 = vunpack.c.l.b16 %v775
        %v1064 = vunpack.c.l.b16 %v776
        %v1065 = vunpack.c.l.b16 %v777
        %v1066 = vunpack.c.l.b16 %v778
        %v1067 = vunpack.c.l.b16 %v779
        %v1068 = vunpack.c.l.b16 %v780
        %v1069 = vunpack.c.l.b16 %v781
        %v1070 = vunpack.c.l.b16 %v782
        %v1071 = vunpack.c.l.b16 %v783
        %v1072 = vunpack.c.l.b16 %v784
        %v1073 = vunpack.c.l.b16 %v785
        %v1074 = vunpack.c.l.b16 %v786
        %v1075 = vunpack.c.l.b16 %v787
        %v1076 = vunpack.c.l.b16 %v788
        %v1077 = vunpack.c.l.b16 %v789
        %v1078 = vunpack.c.l.b16 %v790
        %v1079 = vunpack.c.l.b16 %v791
        %v1080 = vunpack.c.l.b16 %v792
        %v1081 = vunpack.c.l.b16 %v793
        %v1082 = vunpack.c.l.b16 %v794
        %v1083 = vunpack.c.l.b16 %v795
        %v1084 = vunpack.c.l.b16 %v796
        %v1085 = vunpack.c.l.b16 %v797
        %v1086 = vunpack.c.l.b16 %v798
        %v1087 = vunpack.c.l.b16 %v799
        %v1088 = vunpack.c.l.b16 %v800
        %v1089 = vunpack.c.l.b16 %v801
        %v1090 = vunpack.c.l.b16 %v802
        %v1091 = vunpack.c.l.b16 %v803
        %v1092 = vunpack.c.l.b16 %v804
        %v1093 = vunpack.c.l.b16 %v805
        %v1094 = vunpack.c.l.b16 %v806
        %v1095 = vunpack.c.l.b16 %v807
        %v1096 = vunpack.c.l.b16 %v808
        %v1097 = vunpack.c.l.b16 %v809
        %v1098 = vunpack.c.l.b16 %v810
        %v1099 = vunpack.c.l.b16 %v811
        %v1100 = vunpack.c.l.b16 %v812
        %v1101 = vunpack.c.l.b16 %v813
        %v1102 = vunpack.c.l.b16 %v814
        %v1103 = vunpack.c.l.b16 %v815
        %v1104 = vunpack.c.l.b16 %v816
        %v1105 = vunpack.c.l.b16 %v817
        %v1106 = vunpack.c.l.b16 %v818
        %v1107 = vunpack.c.l.b16 %v819
        %v1108 = vunpack.c.l.b16 %v820
        %v1109 = vunpack.c.l.b16 %v821
        %v1110 = vunpack.c.l.b16 %v822
        %v1111 = vunpack.c.l.b16 %v823
        %v1112 = vunpack.c.l.b16 %v824
        %v1113 = vunpack.c.l.b16 %v825
        %v1114 = vunpack.c.l.b16 %v826
        %v1115 = vunpack.c.l.b16 %v827
        %v1116 = vunpack.c.l.b16 %v828
        %v1117 = vunpack.c.l.b16 %v829
        %v1118 = vunpack.c.l.b16 %v830
        %v1119 = vunpack.c.l.b16 %v831
        %v1120 = vunpack.c.l.b16 %v832
        %v1121 = vunpack.c.l.b16 %v833
        %v1122 = vunpack.c.l.b16 %v834
        %v1123 = vunpack.c.l.b16 %v835
        %v1124 = vunpack.c.l.b16 %v836
        %v1125 = vunpack.c.l.b16 %v837
        %v1126 = vunpack.c.l.b16 %v838
        %v1127 = vunpack.c.l.b16 %v839
        %v1128 = vunpack.c.l.b16 %v840
        %v1129 = vunpack.c.l.b16 %v841
        %v1130 = vunpack.c.l.b16 %v842
        %v1131 = vunpack.c.l.b16 %v843
        %v1132 = vunpack.c.l.b16 %v844
        %v1133 = vunpack.c.l.b16 %v845
        %v1134 = vunpack.c.l.b16 %v846
        %v1135 = vunpack.c.l.b16 %v847
        %v1136 = vunpack.c.l.b16 %v848
        %v1137 = vunpack.c.l.b16 %v849
        %v1138 = vunpack.c.l.b16 %v850
        %v1139 = vunpack.c.l.b16 %v851
        %v1140 = vunpack.c.l.b16 %v852
        %v1141 = vunpack.c.l.b16 %v853
        %v1142 = vunpack.c.l.b16 %v854
        %v1143 = vunpack.c.l.b16 %v855
        %v1144 = vpack.c.b16 %v1001, %v1000
        %v1145 = vpack.c.b16 %v1003, %v1002
        %v1146 = vpack.c.b16 %v1005, %v1004
        %v1147 = vpack.c.b16 %v1007, %v1006
        %v1148 = vpack.c.b16 %v1009, %v1008
        %v1149 = vpack.c.b16 %v1011, %v1010
        %v1150 = vpack.c.b16 %v1013, %v1012
        %v1151 = vpack.c.b16 %v1015, %v1014
        %v1152 = vpack.c.b16 %v1017, %v1016
        %v1153 = vpack.c.b16 %v1019, %v1018
        %v1154 = vpack.c.b16 %v1021, %v1020
        %v1155 = vpack.c.b16 %v1023, %v1022
        %v1156 = vpack.c.b16 %v1025, %v1024
        %v1157 = vpack.c.b16 %v1027, %v1026
        %v1158 = vpack.c.b16 %v1029, %v1028
        %v1159 = vpack.c.b16 %v1031, %v1030
        %v1160 = vpack.c.b16 %v1033, %v1032
        %v1161 = vpack.c.b16 %v1035, %v1034
        %v1162 = vpack.c.b16 %v1037, %v1036
        %v1163 = vpack.c.b16 %v1039, %v1038
        %v1164 = vpack.c.b16 %v1041, %v1040
        %v1165 = vpack.c.b16 %v1043, %v1042
        %v1166 = vpack.c.b16 %v1045, %v1044
        %v1167 = vpack.c.b16 %v1047, %v1046
        %v1168 = vpack.c.b16 %v1049, %v1048
        %v1169 = vpack.c.b16 %v1051, %v1050
        %v1170 = vpack.c.b16 %v1053, %v1052
        %v1171 = vpack.c.b16 %v1055, %v1054
        %v1172 = vpack.c.b16 %v1057, %v1056
        %v1173 = vpack.c.b16 %v1059, %v1058
        %v1174 = vpack.c.b16 %v1061, %v1060
        %v1175 = vpack.c.b16 %v1063, %v1062
        %v1176 = vpack.c.b16 %v1065, %v1064
        %v1177 = vpack.c.b16 %v1067, %v1066
        %v1178 = vpack.c.b16 %v1069, %v1068
        %v1179 = vpack.c.b16 %v1071, %v1070
        %v1180 = vpack.c.b16 %v1073, %v1072
        %v1181 = vpack.c.b16 %v1075, %v1074
        %v1182 = vpack.c.b16 %v1077, %v1076
        %v1183 = vpack.c.b16 %v1079, %v1078
        %v1184 = vpack.c.b16 %v1081, %v1080
        %v1185 = vpack.c.b16 %v1083, %v1082
        %v1186 = vpack.c.b16 %v1085, %v1084
        %v1187 = vpack.c.b16 %v1087, %v1086
        %v1188 = vpack.c.b16 %v1089, %v1088
        %v1189 = vpack.c.b16 %v1091, %v1090
        %v1190 = vpack.c.b16 %v1093, %v1092
        %v1191 = vpack.c.b16 %v1095, %v1094
        %v1192 = vpack.c.b16 %v1097, %v1096
        %v1193 = vpack.c.b16 %v1099, %v1098
        %v1194 = vpack.c.b16 %v1101, %v1100
        %v1195 = vpack.c.b16 %v1103, %v1102
        %v1196 = vpack.c.b16 %v1105, %v1104
        %v1197 = vpack.c.b16 %v1107, %v1106
        %v1198 = vpack.c.b16 %v1109, %v1108
        %v1199 = vpack.c.b16 %v1111, %v1110
        %v1200 = vpack.c.b16 %v1113, %v1112
        %v1201 = vpack.c.b16 %v1115, %v1114
        %v1202 = vpack.c.b16 %v1117, %v1116
        %v1203 = vpack.c.b16 %v1119, %v1118
        %v1204 = vpack.c.b16 %v1121, %v1120
        %v1205 = vpack.c.b16 %v1123, %v1122
        %v1206 = vpack.c.b16 %v1125, %v1124
        %v1207 = vpack.c.b16 %v1127, %v1126
        %v1208 = vpack.c.b16 %v1129, %v1128
        %v1209 = vpack.c.b16 %v1131, %v1130
        %v1210 = vpack.c.b16 %v1133, %v1132
        %v1211 = vpack.c.b16 %v1135, %v1134
        %v1212 = vpack.c.b16 %v1137, %v1136
        %v1213 = vpack.c.b16 %v1139, %v1138
        %v1214 = vpack.c.b16 %v1141, %v1140
        %v1215 = vpack.c.b16 %v1143, %v1142
        %1288 = vmatprep.subr.bf16.mxu0 0
        %1289 = vmatpush1.bf16.msra.mxu0 %v1144
        %1290 = vmatprep.subr.bf16.mxu0 0
        %1291 = vmatpush1.bf16.msra.mxu0 %v1145
        %1292 = vmatprep.subr.bf16.mxu0 0
        %1293 = vmatpush1.bf16.msra.mxu0 %v1146
        %1294 = vmatprep.subr.bf16.mxu0 0
        %1295 = vmatpush1.bf16.msra.mxu0 %v1147
        %1296 = vmatprep.subr.bf16.mxu0 0
        %1297 = vmatpush1.bf16.msra.mxu0 %v1148
        %1298 = vmatprep.subr.bf16.mxu0 0
        %1299 = vmatpush1.bf16.msra.mxu0 %v1149
        %1300 = vmatprep.subr.bf16.mxu0 0
        %1301 = vmatpush1.bf16.msra.mxu0 %v1150
        %1302 = vmatprep.subr.bf16.mxu0 0
        %1303 = vmatpush1.bf16.msra.mxu0 %v1151
        %1304 = vmatprep.subr.bf16.mxu0 0
        %1305 = vmatpush1.bf16.msra.mxu0 %v1152
        %1306 = vmatprep.subr.bf16.mxu0 0
        %1307 = vmatpush1.bf16.msra.mxu0 %v1153
        %1308 = vmatprep.subr.bf16.mxu0 0
        %1309 = vmatpush1.bf16.msra.mxu0 %v1154
        %1310 = vmatprep.subr.bf16.mxu0 0
        %1311 = vmatpush1.bf16.msra.mxu0 %v1155
        %1312 = vmatprep.subr.bf16.mxu0 0
        %1313 = vmatpush1.bf16.msra.mxu0 %v1156
        %1314 = vmatprep.subr.bf16.mxu0 0
        %1315 = vmatpush1.bf16.msra.mxu0 %v1157
        %1316 = vmatprep.subr.bf16.mxu0 0
        %1317 = vmatpush1.bf16.msra.mxu0 %v1158
        %1318 = vmatprep.subr.bf16.mxu0 0
        %1319 = vmatpush1.bf16.msra.mxu0 %v1159
        %1320 = vmatprep.mubr.bf16.mxu0 %v640
        %1321 = vmatmul.mubr.bf16.gmra.mrb[0].mxu0 %v608
        %v1322 = vpop.f32.mrb[0].mxu0
        %v1323 = vadd.f32 0.0, %v1322
        %v1324 = vpop.f32.mrb[0].mxu0
        %v1325 = vpop.f32.mrb[0].mxu0
        %v1326 = vadd.f32 0.0, %v1325
        %v1327 = vpop.f32.mrb[0].mxu0
        %1328 = vmatprep.mubr.bf16.mxu0 %v641
        %1329 = vmatmul.mubr.bf16.gmra.mrb[0].mxu0 %v609
        %v1330 = vpop.f32.mrb[0].mxu0
        %v1331 = vadd.f32 0.0, %v1330
        %v1332 = vpop.f32.mrb[0].mxu0
        %v1333 = vpop.f32.mrb[0].mxu0
        %v1334 = vadd.f32 0.0, %v1333
        %v1335 = vpop.f32.mrb[0].mxu0
        %1336 = vmatprep.mubr.bf16.mxu0 %v642
        %1337 = vmatmul.mubr.bf16.gmra.mrb[0].mxu0 %v610
        %v1338 = vpop.f32.mrb[0].mxu0
        %v1339 = vadd.f32 0.0, %v1338
        %v1340 = vpop.f32.mrb[0].mxu0
        %v1341 = vpop.f32.mrb[0].mxu0
        %v1342 = vadd.f32 0.0, %v1341
        %v1343 = vpop.f32.mrb[0].mxu0
        %1344 = vmatprep.mubr.bf16.mxu0 %v643
        %1345 = vmatmul.mubr.bf16.gmra.mrb[0].mxu0 %v611
        %v1346 = vpop.f32.mrb[0].mxu0
        %v1347 = vadd.f32 0.0, %v1346
        %v1348 = vpop.f32.mrb[0].mxu0
        %v1349 = vpop.f32.mrb[0].mxu0
        %v1350 = vadd.f32 0.0, %v1349
        %v1351 = vpop.f32.mrb[0].mxu0
        %1352 = vmatprep.mubr.bf16.mxu0 %v644
        %1353 = vmatmul.mubr.bf16.gmra.mrb[0].mxu0 %v612
        %v1354 = vpop.f32.mrb[0].mxu0
        %v1355 = vadd.f32 0.0, %v1354
        %v1356 = vpop.f32.mrb[0].mxu0
        %v1357 = vpop.f32.mrb[0].mxu0
        %v1358 = vadd.f32 0.0, %v1357
        %v1359 = vpop.f32.mrb[0].mxu0
        %1360 = vmatprep.mubr.bf16.mxu0 %v645
        %1361 = vmatmul.mubr.bf16.gmra.mrb[0].mxu0 %v613
        %v1362 = vpop.f32.mrb[0].mxu0
        %v1363 = vadd.f32 0.0, %v1362
        %v1364 = vpop.f32.mrb[0].mxu0
        %v1365 = vpop.f32.mrb[0].mxu0
        %v1366 = vadd.f32 0.0, %v1365
        %v1367 = vpop.f32.mrb[0].mxu0
        %1368 = vmatprep.mubr.bf16.mxu0 %v646
        %1369 = vmatmul.mubr.bf16.gmra.mrb[0].mxu0 %v614
        %v1370 = vpop.f32.mrb[0].mxu0
        %v1371 = vadd.f32 0.0, %v1370
        %v1372 = vpop.f32.mrb[0].mxu0
        %v1373 = vpop.f32.mrb[0].mxu0
        %v1374 = vadd.f32 0.0, %v1373
        %v1375 = vpop.f32.mrb[0].mxu0
        %1376 = vmatprep.mubr.bf16.mxu0 %v647
        %1377 = vmatmul.mubr.bf16.gmra.mrb[0].mxu0 %v615
        %v1378 = vpop.f32.mrb[0].mxu0
        %v1379 = vadd.f32 0.0, %v1378
        %v1380 = vpop.f32.mrb[0].mxu0
        %v1381 = vpop.f32.mrb[0].mxu0
        %v1382 = vadd.f32 0.0, %v1381
        %v1383 = vpop.f32.mrb[0].mxu0
        %1384 = vdwg.mxu0
        %1385 = vmatprep.subr.bf16.mxu0 0
        %1386 = vmatpush1.bf16.msra.mxu0 %v1160
        %1387 = vmatprep.subr.bf16.mxu0 0
        %1388 = vmatpush1.bf16.msra.mxu0 %v1161
        %1389 = vmatprep.subr.bf16.mxu0 0
        %1390 = vmatpush1.bf16.msra.mxu0 %v1162
        %1391 = vmatprep.subr.bf16.mxu0 0
        %1392 = vmatpush1.bf16.msra.mxu0 %v1163
        %1393 = vmatprep.subr.bf16.mxu0 0
        %1394 = vmatpush1.bf16.msra.mxu0 %v1164
        %1395 = vmatprep.subr.bf16.mxu0 0
        %1396 = vmatpush1.bf16.msra.mxu0 %v1165
        %1397 = vmatprep.subr.bf16.mxu0 0
        %1398 = vmatpush1.bf16.msra.mxu0 %v1166
        %1399 = vmatprep.subr.bf16.mxu0 0
        %1400 = vmatpush1.bf16.msra.mxu0 %v1167
        %1401 = vmatprep.subr.bf16.mxu0 0
        %1402 = vmatpush1.bf16.msra.mxu0 %v1168
        %1403 = vmatprep.subr.bf16.mxu0 0
        %1404 = vmatpush1.bf16.msra.mxu0 %v1169
        %1405 = vmatprep.subr.bf16.mxu0 0
        %1406 = vmatpush1.bf16.msra.mxu0 %v1170
        %1407 = vmatprep.subr.bf16.mxu0 0
        %1408 = vmatpush1.bf16.msra.mxu0 %v1171
        %1409 = vmatprep.subr.bf16.mxu0 0
        %1410 = vmatpush1.bf16.msra.mxu0 %v1172
        %1411 = vmatprep.subr.bf16.mxu0 0
        %1412 = vmatpush1.bf16.msra.mxu0 %v1173
        %1413 = vmatprep.subr.bf16.mxu0 0
        %1414 = vmatpush1.bf16.msra.mxu0 %v1174
        %1415 = vmatprep.subr.bf16.mxu0 0
        %1416 = vmatpush1.bf16.msra.mxu0 %v1175
        %1417 = vmatprep.mubr.bf16.mxu0 %v609
        %1418 = vmatmul.mubr.bf16.gmra.mrb[0].mxu0 %v672
        %v1419 = vpop.f32.mrb[0].mxu0
        %v1420 = vadd.f32 %v1323, %v1419
        %v1421 = vpop.f32.mrb[0].mxu0
        %v1422 = vpop.f32.mrb[0].mxu0
        %v1423 = vadd.f32 %v1326, %v1422
        %v1424 = vpop.f32.mrb[0].mxu0
        %1425 = vmatprep.mubr.bf16.mxu0 %v610
        %1426 = vmatmul.mubr.bf16.gmra.mrb[0].mxu0 %v673
        %v1427 = vpop.f32.mrb[0].mxu0
        %v1428 = vadd.f32 %v1331, %v1427
        %v1429 = vpop.f32.mrb[0].mxu0
        %v1430 = vpop.f32.mrb[0].mxu0
        %v1431 = vadd.f32 %v1334, %v1430
        %v1432 = vpop.f32.mrb[0].mxu0
        %1433 = vmatprep.mubr.bf16.mxu0 %v611
        %1434 = vmatmul.mubr.bf16.gmra.mrb[0].mxu0 %v674
        %v1435 = vpop.f32.mrb[0].mxu0
        %v1436 = vadd.f32 %v1339, %v1435
        %v1437 = vpop.f32.mrb[0].mxu0
        %v1438 = vpop.f32.mrb[0].mxu0
        %v1439 = vadd.f32 %v1342, %v1438
        %v1440 = vpop.f32.mrb[0].mxu0
        %1441 = vmatprep.mubr.bf16.mxu0 %v612
        %1442 = vmatmul.mubr.bf16.gmra.mrb[0].mxu0 %v675
        %v1443 = vpop.f32.mrb[0].mxu0
        %v1444 = vadd.f32 %v1347, %v1443
        %v1445 = vpop.f32.mrb[0].mxu0
        %v1446 = vpop.f32.mrb[0].mxu0
        %v1447 = vadd.f32 %v1350, %v1446
        %v1448 = vpop.f32.mrb[0].mxu0
        %1449 = vmatprep.mubr.bf16.mxu0 %v613
        %1450 = vmatmul.mubr.bf16.gmra.mrb[0].mxu0 %v676
        %v1451 = vpop.f32.mrb[0].mxu0
        %v1452 = vadd.f32 %v1355, %v1451
        %v1453 = vpop.f32.mrb[0].mxu0
        %v1454 = vpop.f32.mrb[0].mxu0
        %v1455 = vadd.f32 %v1358, %v1454
        %v1456 = vpop.f32.mrb[0].mxu0
        %1457 = vmatprep.mubr.bf16.mxu0 %v614
        %1458 = vmatmul.mubr.bf16.gmra.mrb[0].mxu0 %v677
        %v1459 = vpop.f32.mrb[0].mxu0
        %v1460 = vadd.f32 %v1363, %v1459
        %v1461 = vpop.f32.mrb[0].mxu0
        %v1462 = vpop.f32.mrb[0].mxu0
        %v1463 = vadd.f32 %v1366, %v1462
        %v1464 = vpop.f32.mrb[0].mxu0
        %1465 = vmatprep.mubr.bf16.mxu0 %v615
        %1466 = vmatmul.mubr.bf16.gmra.mrb[0].mxu0 %v678
        %v1467 = vpop.f32.mrb[0].mxu0
        %v1468 = vadd.f32 %v1371, %v1467
        %v1469 = vpop.f32.mrb[0].mxu0
        %v1470 = vpop.f32.mrb[0].mxu0
        %v1471 = vadd.f32 %v1374, %v1470
        %v1472 = vpop.f32.mrb[0].mxu0
        %1473 = vmatprep.mubr.bf16.mxu0 %v690
        %1474 = vmatmul.mubr.bf16.gmra.mrb[0].mxu0 %v679
        %v1475 = vpop.f32.mrb[0].mxu0
        %v1476 = vadd.f32 %v1379, %v1475
        %v1477 = vpop.f32.mrb[0].mxu0
        %v1478 = vpop.f32.mrb[0].mxu0
        %v1479 = vadd.f32 %v1382, %v1478
        %v1480 = vpop.f32.mrb[0].mxu0
        %1481 = vdwg.mxu0
        %1482 = vmatprep.subr.bf16.mxu0 0
        %1483 = vmatpush1.bf16.msra.mxu0 %v1176
        %1484 = vmatprep.subr.bf16.mxu0 0
        %1485 = vmatpush1.bf16.msra.mxu0 %v1177
        %1486 = vmatprep.subr.bf16.mxu0 0
        %1487 = vmatpush1.bf16.msra.mxu0 %v1178
        %1488 = vmatprep.subr.bf16.mxu0 0
        %1489 = vmatpush1.bf16.msra.mxu0 %v1179
        %1490 = vmatprep.subr.bf16.mxu0 0
        %1491 = vmatpush1.bf16.msra.mxu0 %v1180
        %1492 = vmatprep.subr.bf16.mxu0 0
        %1493 = vmatpush1.bf16.msra.mxu0 %v1181
        %1494 = vmatprep.subr.bf16.mxu0 0
        %1495 = vmatpush1.bf16.msra.mxu0 %v1182
        %1496 = vmatprep.subr.bf16.mxu0 0
        %1497 = vmatpush1.bf16.msra.mxu0 %v1183
        %1498 = vmatprep.subr.bf16.mxu0 0
        %1499 = vmatpush1.bf16.msra.mxu0 %v1184
        %1500 = vmatprep.subr.bf16.mxu0 0
        %1501 = vmatpush1.bf16.msra.mxu0 %v1185
        %1502 = vmatprep.subr.bf16.mxu0 0
        %1503 = vmatpush1.bf16.msra.mxu0 %v1186
        %1504 = vmatprep.subr.bf16.mxu0 0
        %1505 = vmatpush1.bf16.msra.mxu0 %v1187
        %1506 = vmatprep.subr.bf16.mxu0 0
        %1507 = vmatpush1.bf16.msra.mxu0 %v1188
        %1508 = vmatprep.subr.bf16.mxu0 0
        %1509 = vmatpush1.bf16.msra.mxu0 %v1189
        %1510 = vmatprep.subr.bf16.mxu0 0
        %1511 = vmatpush1.bf16.msra.mxu0 %v1190
        %1512 = vmatprep.subr.bf16.mxu0 0
        %1513 = vmatpush1.bf16.msra.mxu0 %v1191
        %1514 = vmatprep.mubr.bf16.mxu0 %v673
        %1515 = vmatmul.mubr.bf16.gmra.mrb[0].mxu0 %v641
        %v1516 = vpop.f32.mrb[0].mxu0
        %v1517 = vadd.f32 %v1420, %v1516
        %v1518 = vpop.f32.mrb[0].mxu0
        %v1519 = vpop.f32.mrb[0].mxu0
        %v1520 = vadd.f32 %v1423, %v1519
        %v1521 = vpop.f32.mrb[0].mxu0
        %1522 = vmatprep.mubr.bf16.mxu0 %v674
        %1523 = vmatmul.mubr.bf16.gmra.mrb[0].mxu0 %v642
        %v1524 = vpop.f32.mrb[0].mxu0
        %v1525 = vadd.f32 %v1428, %v1524
        %v1526 = vpop.f32.mrb[0].mxu0
        %v1527 = vpop.f32.mrb[0].mxu0
        %v1528 = vadd.f32 %v1431, %v1527
        %v1529 = vpop.f32.mrb[0].mxu0
        %1530 = vmatprep.mubr.bf16.mxu0 %v675
        %1531 = vmatmul.mubr.bf16.gmra.mrb[0].mxu0 %v643
        %v1532 = vpop.f32.mrb[0].mxu0
        %v1533 = vadd.f32 %v1436, %v1532
        %v1534 = vpop.f32.mrb[0].mxu0
        %v1535 = vpop.f32.mrb[0].mxu0
        %v1536 = vadd.f32 %v1439, %v1535
        %v1537 = vpop.f32.mrb[0].mxu0
        %1538 = vmatprep.mubr.bf16.mxu0 %v676
        %1539 = vmatmul.mubr.bf16.gmra.mrb[0].mxu0 %v644
        %v1540 = vpop.f32.mrb[0].mxu0
        %v1541 = vadd.f32 %v1444, %v1540
        %v1542 = vpop.f32.mrb[0].mxu0
        %v1543 = vpop.f32.mrb[0].mxu0
        %v1544 = vadd.f32 %v1447, %v1543
        %v1545 = vpop.f32.mrb[0].mxu0
        %1546 = vmatprep.mubr.bf16.mxu0 %v677
        %1547 = vmatmul.mubr.bf16.gmra.mrb[0].mxu0 %v645
        %v1548 = vpop.f32.mrb[0].mxu0
        %v1549 = vadd.f32 %v1452, %v1548
        %v1550 = vpop.f32.mrb[0].mxu0
        %v1551 = vpop.f32.mrb[0].mxu0
        %v1552 = vadd.f32 %v1455, %v1551
        %v1553 = vpop.f32.mrb[0].mxu0
        %1554 = vmatprep.mubr.bf16.mxu0 %v678
        %1555 = vmatmul.mubr.bf16.gmra.mrb[0].mxu0 %v646
        %v1556 = vpop.f32.mrb[0].mxu0
        %v1557 = vadd.f32 %v1460, %v1556
        %v1558 = vpop.f32.mrb[0].mxu0
        %v1559 = vpop.f32.mrb[0].mxu0
        %v1560 = vadd.f32 %v1463, %v1559
        %v1561 = vpop.f32.mrb[0].mxu0
        %1562 = vmatprep.mubr.bf16.mxu0 %v679
        %1563 = vmatmul.mubr.bf16.gmra.mrb[0].mxu0 %v647
        %v1564 = vpop.f32.mrb[0].mxu0
        %v1565 = vadd.f32 %v1468, %v1564
        %v1566 = vpop.f32.mrb[0].mxu0
        %v1567 = vpop.f32.mrb[0].mxu0
        %v1568 = vadd.f32 %v1471, %v1567
        %v1569 = vpop.f32.mrb[0].mxu0
        %1570 = vmatprep.mubr.bf16.mxu0 %v698
        %1571 = vmatmul.mubr.bf16.gmra.mrb[0].mxu0 %v694
        %v1572 = vpop.f32.mrb[0].mxu0
        %v1573 = vadd.f32 %v1476, %v1572
        %v1574 = vpop.f32.mrb[0].mxu0
        %v1575 = vpop.f32.mrb[0].mxu0
        %v1576 = vadd.f32 %v1479, %v1575
        %v1577 = vpop.f32.mrb[0].mxu0
        %1578 = vdwg.mxu0
        %1579 = vmatprep.subr.bf16.mxu0 0
        %1580 = vmatpush1.bf16.msra.mxu0 %v1192
        %1581 = vmatprep.subr.bf16.mxu0 0
        %1582 = vmatpush1.bf16.msra.mxu0 %v1193
        %1583 = vmatprep.subr.bf16.mxu0 0
        %1584 = vmatpush1.bf16.msra.mxu0 %v1194
        %1585 = vmatprep.subr.bf16.mxu0 0
        %1586 = vmatpush1.bf16.msra.mxu0 %v1195
        %1587 = vmatprep.subr.bf16.mxu0 0
        %1588 = vmatpush1.bf16.msra.mxu0 %v1196
        %1589 = vmatprep.subr.bf16.mxu0 0
        %1590 = vmatpush1.bf16.msra.mxu0 %v1197
        %1591 = vmatprep.subr.bf16.mxu0 0
        %1592 = vmatpush1.bf16.msra.mxu0 %v1198
        %1593 = vmatprep.subr.bf16.mxu0 0
        %1594 = vmatpush1.bf16.msra.mxu0 %v1199
        %1595 = vmatprep.subr.bf16.mxu0 0
        %1596 = vmatpush1.bf16.msra.mxu0 %v1200
        %1597 = vmatprep.subr.bf16.mxu0 0
        %1598 = vmatpush1.bf16.msra.mxu0 %v1201
        %1599 = vmatprep.subr.bf16.mxu0 0
        %1600 = vmatpush1.bf16.msra.mxu0 %v1202
        %1601 = vmatprep.subr.bf16.mxu0 0
        %1602 = vmatpush1.bf16.msra.mxu0 %v1203
        %1603 = vmatprep.subr.bf16.mxu0 0
        %1604 = vmatpush1.bf16.msra.mxu0 %v1204
        %1605 = vmatprep.subr.bf16.mxu0 0
        %1606 = vmatpush1.bf16.msra.mxu0 %v1205
        %1607 = vmatprep.subr.bf16.mxu0 0
        %1608 = vmatpush1.bf16.msra.mxu0 %v1206
        %1609 = vmatprep.subr.bf16.mxu0 0
        %1610 = vmatpush1.bf16.msra.mxu0 %v1207
        %1611 = vmatprep.mubr.bf16.mxu0 %v642
        %1612 = vmatmul.mubr.bf16.gmra.mrb[0].mxu0 %v610
        %v1613 = vpop.f32.mrb[0].mxu0
        %v1614 = vadd.f32 %v1517, %v1613
        %v1615 = vpop.f32.mrb[0].mxu0
        %v1616 = vpop.f32.mrb[0].mxu0
        %v1617 = vadd.f32 %v1520, %v1616
        %v1618 = vpop.f32.mrb[0].mxu0
        %1619 = vmatprep.mubr.bf16.mxu0 %v643
        %1620 = vmatmul.mubr.bf16.gmra.mrb[0].mxu0 %v611
        %v1621 = vpop.f32.mrb[0].mxu0
        %v1622 = vadd.f32 %v1525, %v1621
        %v1623 = vpop.f32.mrb[0].mxu0
        %v1624 = vpop.f32.mrb[0].mxu0
        %v1625 = vadd.f32 %v1528, %v1624
        %v1626 = vpop.f32.mrb[0].mxu0
        %1627 = vmatprep.mubr.bf16.mxu0 %v644
        %1628 = vmatmul.mubr.bf16.gmra.mrb[0].mxu0 %v612
        %v1629 = vpop.f32.mrb[0].mxu0
        %v1630 = vadd.f32 %v1533, %v1629
        %v1631 = vpop.f32.mrb[0].mxu0
        %v1632 = vpop.f32.mrb[0].mxu0
        %v1633 = vadd.f32 %v1536, %v1632
        %v1634 = vpop.f32.mrb[0].mxu0
        %1635 = vmatprep.mubr.bf16.mxu0 %v645
        %1636 = vmatmul.mubr.bf16.gmra.mrb[0].mxu0 %v613
        %v1637 = vpop.f32.mrb[0].mxu0
        %v1638 = vadd.f32 %v1541, %v1637
        %v1639 = vpop.f32.mrb[0].mxu0
        %v1640 = vpop.f32.mrb[0].mxu0
        %v1641 = vadd.f32 %v1544, %v1640
        %v1642 = vpop.f32.mrb[0].mxu0
        %1643 = vmatprep.mubr.bf16.mxu0 %v646
        %1644 = vmatmul.mubr.bf16.gmra.mrb[0].mxu0 %v614
        %v1645 = vpop.f32.mrb[0].mxu0
        %v1646 = vadd.f32 %v1549, %v1645
        %v1647 = vpop.f32.mrb[0].mxu0
        %v1648 = vpop.f32.mrb[0].mxu0
        %v1649 = vadd.f32 %v1552, %v1648
        %v1650 = vpop.f32.mrb[0].mxu0
        %1651 = vmatprep.mubr.bf16.mxu0 %v647
        %1652 = vmatmul.mubr.bf16.gmra.mrb[0].mxu0 %v615
        %v1653 = vpop.f32.mrb[0].mxu0
        %v1654 = vadd.f32 %v1557, %v1653
        %v1655 = vpop.f32.mrb[0].mxu0
        %v1656 = vpop.f32.mrb[0].mxu0
        %v1657 = vadd.f32 %v1560, %v1656
        %v1658 = vpop.f32.mrb[0].mxu0
        %1659 = vmatprep.mubr.bf16.mxu0 %v694
        %1660 = vmatmul.mubr.bf16.gmra.mrb[0].mxu0 %v690
        %v1661 = vpop.f32.mrb[0].mxu0
        %v1662 = vadd.f32 %v1565, %v1661
        %v1663 = vpop.f32.mrb[0].mxu0
        %v1664 = vpop.f32.mrb[0].mxu0
        %v1665 = vadd.f32 %v1568, %v1664
        %v1666 = vpop.f32.mrb[0].mxu0
        %1667 = vmatprep.mubr.bf16.mxu0 %v706
        %1668 = vmatmul.mubr.bf16.gmra.mrb[0].mxu0 %v702
        %v1669 = vpop.f32.mrb[0].mxu0
        %v1670 = vadd.f32 %v1573, %v1669
        %v1671 = vpop.f32.mrb[0].mxu0
        %v1672 = vpop.f32.mrb[0].mxu0
        %v1673 = vadd.f32 %v1576, %v1672
        %v1674 = vpop.f32.mrb[0].mxu0
        %1675 = vdwg.mxu0
        %1676 = vmatprep.subr.bf16.mxu0 0
        %1677 = vmatpush1.bf16.msra.mxu0 %v1208
        %1678 = vmatprep.subr.bf16.mxu0 0
        %1679 = vmatpush1.bf16.msra.mxu0 %v1209
        %1680 = vmatprep.subr.bf16.mxu0 0
        %1681 = vmatpush1.bf16.msra.mxu0 %v1210
        %1682 = vmatprep.subr.bf16.mxu0 0
        %1683 = vmatpush1.bf16.msra.mxu0 %v1211
        %1684 = vmatprep.subr.bf16.mxu0 0
        %1685 = vmatpush1.bf16.msra.mxu0 %v1212
        %1686 = vmatprep.subr.bf16.mxu0 0
        %1687 = vmatpush1.bf16.msra.mxu0 %v1213
        %1688 = vmatprep.subr.bf16.mxu0 0
        %1689 = vmatpush1.bf16.msra.mxu0 %v1214
        %1690 = vmatprep.subr.bf16.mxu0 0
        %1691 = vmatpush1.bf16.msra.mxu0 %v1215
        %1692 = vmatprep.subr.bf16.mxu0 0
        %1693 = vmatpush1.bf16.msra.mxu0 0
        %1694 = vmatprep.subr.bf16.mxu0 0
        %1695 = vmatpush1.bf16.msra.mxu0 0
        %1696 = vmatprep.subr.bf16.mxu0 0
        %1697 = vmatpush1.bf16.msra.mxu0 0
        %1698 = vmatprep.subr.bf16.mxu0 0
        %1699 = vmatpush1.bf16.msra.mxu0 0
        %1700 = vmatprep.subr.bf16.mxu0 0
        %1701 = vmatpush1.bf16.msra.mxu0 0
        %1702 = vmatprep.subr.bf16.mxu0 0
        %1703 = vmatpush1.bf16.msra.mxu0 0
        %1704 = vmatprep.subr.bf16.mxu0 0
        %1705 = vmatpush1.bf16.msra.mxu0 0
        %1706 = vmatprep.subr.bf16.mxu0 0
        %1707 = vmatpush1.bf16.msra.mxu0 0
        %1708 = vmatprep.mubr.bf16.mxu0 0
        %1709 = vmatmul.mubr.bf16.gmra.mrb[0].mxu0 %v674
        %v1710 = vpop.f32.mrb[0].mxu0
        %v1711 = vadd.f32 %v1614, %v1710
        %v1712 = vpop.f32.mrb[0].mxu0
        %v1713 = vpop.f32.mrb[0].mxu0
        %v1714 = vadd.f32 %v1617, %v1713
        %v1715 = vpop.f32.mrb[0].mxu0
        %1716 = vmatprep.mubr.bf16.mxu0 0
        %1717 = vmatmul.mubr.bf16.gmra.mrb[0].mxu0 %v675
        %v1718 = vpop.f32.mrb[0].mxu0
        %v1719 = vadd.f32 %v1622, %v1718
        %v1720 = vpop.f32.mrb[0].mxu0
        %v1721 = vpop.f32.mrb[0].mxu0
        %v1722 = vadd.f32 %v1625, %v1721
        %v1723 = vpop.f32.mrb[0].mxu0
        %1724 = vmatprep.mubr.bf16.mxu0 0
        %1725 = vmatmul.mubr.bf16.gmra.mrb[0].mxu0 %v676
        %v1726 = vpop.f32.mrb[0].mxu0
        %v1727 = vadd.f32 %v1630, %v1726
        %v1728 = vpop.f32.mrb[0].mxu0
        %v1729 = vpop.f32.mrb[0].mxu0
        %v1730 = vadd.f32 %v1633, %v1729
        %v1731 = vpop.f32.mrb[0].mxu0
        %1732 = vmatprep.mubr.bf16.mxu0 0
        %1733 = vmatmul.mubr.bf16.gmra.mrb[0].mxu0 %v677
        %v1734 = vpop.f32.mrb[0].mxu0
        %v1735 = vadd.f32 %v1638, %v1734
        %v1736 = vpop.f32.mrb[0].mxu0
        %v1737 = vpop.f32.mrb[0].mxu0
        %v1738 = vadd.f32 %v1641, %v1737
        %v1739 = vpop.f32.mrb[0].mxu0
        %1740 = vmatprep.mubr.bf16.mxu0 0
        %1741 = vmatmul.mubr.bf16.gmra.mrb[0].mxu0 %v678
        %v1742 = vpop.f32.mrb[0].mxu0
        %v1743 = vadd.f32 %v1646, %v1742
        %v1744 = vpop.f32.mrb[0].mxu0
        %v1745 = vpop.f32.mrb[0].mxu0
        %v1746 = vadd.f32 %v1649, %v1745
        %v1747 = vpop.f32.mrb[0].mxu0
        %1748 = vmatprep.mubr.bf16.mxu0 0
        %1749 = vmatmul.mubr.bf16.gmra.mrb[0].mxu0 %v679
        %v1750 = vpop.f32.mrb[0].mxu0
        %v1751 = vadd.f32 %v1654, %v1750
        %v1752 = vpop.f32.mrb[0].mxu0
        %v1753 = vpop.f32.mrb[0].mxu0
        %v1754 = vadd.f32 %v1657, %v1753
        %v1755 = vpop.f32.mrb[0].mxu0
        %1756 = vmatprep.mubr.bf16.mxu0 0
        %1757 = vmatmul.mubr.bf16.gmra.mrb[0].mxu0 %v698
        %v1758 = vpop.f32.mrb[0].mxu0
        %v1759 = vadd.f32 %v1662, %v1758
        %v1760 = vpop.f32.mrb[0].mxu0
        %v1761 = vpop.f32.mrb[0].mxu0
        %v1762 = vadd.f32 %v1665, %v1761
        %v1763 = vpop.f32.mrb[0].mxu0
        %1764 = vmatprep.mubr.bf16.mxu0 0
        %1765 = vmatmul.mubr.bf16.gmra.mrb[0].mxu0 %v710
        %v1766 = vpop.f32.mrb[0].mxu0
        %v1767 = vadd.f32 %v1670, %v1766
        %v1768 = vpop.f32.mrb[0].mxu0
        %v1769 = vpop.f32.mrb[0].mxu0
        %v1770 = vadd.f32 %v1673, %v1769
        %v1771 = vpop.f32.mrb[0].mxu0
        %1772 = vdwg.mxu0
        %v1773 = vld [vmem:[%s2] sm:$0x1]
        %v1775 = vlaneseq
        %v1776 = vshrl.u32 %v1775, 7
        %v1777 = vsub.s32 0, %v1776
        %v1778 = vrot.slane %v1773, %v1777
        %v1780 = vmul.f32 %v1711, %v1778
        %v1781 = vmul.f32 %v1714, %v1778
        %v1782 = vmul.f32 %v1719, %v1778
        %v1783 = vmul.f32 %v1722, %v1778
        %v1784 = vmul.f32 %v1727, %v1778
        %v1785 = vmul.f32 %v1730, %v1778
        %v1786 = vmul.f32 %v1735, %v1778
        %v1787 = vmul.f32 %v1738, %v1778
        %v1788 = vmul.f32 %v1743, %v1778
        %v1789 = vmul.f32 %v1746, %v1778
        %v1790 = vmul.f32 %v1751, %v1778
        %v1791 = vmul.f32 %v1754, %v1778
        %v1792 = vmul.f32 %v1759, %v1778
        %v1793 = vmul.f32 %v1762, %v1778
        %v1794 = vmul.f32 %v1767, %v1778
        %v1795 = vmul.f32 %v1770, %v1778
        %v1796 = vld [vmem:[%s3] sm:$0x1]
        %v1798 = vlaneseq
        %v1799 = vshrl.u32 %v1798, 7
        %v1800 = vsub.s32 0, %v1799
        %v1801 = vrot.slane %v1796, %v1800
        %v1803 = vadd.f32 %v1780, %v1801
        %v1804 = vadd.f32 %v1781, %v1801
        %v1805 = vadd.f32 %v1782, %v1801
        %v1806 = vadd.f32 %v1783, %v1801
        %v1807 = vadd.f32 %v1784, %v1801
        %v1808 = vadd.f32 %v1785, %v1801
        %v1809 = vadd.f32 %v1786, %v1801
        %v1810 = vadd.f32 %v1787, %v1801
        %v1811 = vadd.f32 %v1788, %v1801
        %v1812 = vadd.f32 %v1789, %v1801
        %v1813 = vadd.f32 %v1790, %v1801
        %v1814 = vadd.f32 %v1791, %v1801
        %v1815 = vadd.f32 %v1792, %v1801
        %v1816 = vadd.f32 %v1793, %v1801
        %v1817 = vadd.f32 %v1794, %v1801
        %v1818 = vadd.f32 %v1795, %v1801
        %v1819 = vmax.f32 %v1803, 0.0
        %v1820 = vmax.f32 %v1804, 0.0
        %v1821 = vmax.f32 %v1805, 0.0
        %v1822 = vmax.f32 %v1806, 0.0
        %v1823 = vmax.f32 %v1807, 0.0
        %v1824 = vmax.f32 %v1808, 0.0
        %v1825 = vmax.f32 %v1809, 0.0
        %v1826 = vmax.f32 %v1810, 0.0
        %v1827 = vmax.f32 %v1811, 0.0
        %v1828 = vmax.f32 %v1812, 0.0
        %v1829 = vmax.f32 %v1813, 0.0
        %v1830 = vmax.f32 %v1814, 0.0
        %v1831 = vmax.f32 %v1815, 0.0
        %v1832 = vmax.f32 %v1816, 0.0
        %v1833 = vmax.f32 %v1817, 0.0
        %v1834 = vmax.f32 %v1818, 0.0
        %1835 = vst [vmem:[%s204] sm:$0xff] %v1819
        %1836 = vst [vmem:[%s204 + $0x8] sm:$0xff] %v1820
        %1837 = vst [vmem:[%s204 + $0x10] sm:$0xff] %v1821
        %1838 = vst [vmem:[%s204 + $0x18] sm:$0xff] %v1822
        %1839 = vst [vmem:[%s204 + $0x20] sm:$0xff] %v1823
        %1840 = vst [vmem:[%s204 + $0x28] sm:$0xff] %v1824
        %1841 = vst [vmem:[%s204 + $0x30] sm:$0xff] %v1825
        %1842 = vst [vmem:[%s204 + $0x38] sm:$0xff] %v1826
        %1843 = vst [vmem:[%s204 + $0x40] sm:$0xff] %v1827
        %1844 = vst [vmem:[%s204 + $0x48] sm:$0xff] %v1828
        %1845 = vst [vmem:[%s204 + $0x50] sm:$0xff] %v1829
        %1846 = vst [vmem:[%s204 + $0x58] sm:$0xff] %v1830
        %1847 = vst [vmem:[%s204 + $0x60] sm:$0xff] %v1831
        %1848 = vst [vmem:[%s204 + $0x68] sm:$0xff] %v1832
        %1849 = vst [vmem:[%s204 + $0x70] sm:$0xff] %v1833
        %1850 = vst [vmem:[%s204 + $0x78] sm:$0xff] %v1834
        %s1851 = sand.u32 %s129, 1
        %s1852 = scalar_lea.sflag [#allocation3], %s1851
        %s1853 = sand.u32 %s129, 1
        %s1854 = smul.addr %s1853, 128
        %s1855 = scalar_lea.vmem [#allocation2], %s1854
        // Predicated region
        $region37: #{tpu_custom_call.1} parent=35 // pred_check
          %p1856 = pneg %p139
        $region38: #{tpu_custom_call.1} parent=35 // pred_check_branch
          %1858 = sbr.rel (%p1856) target = $region40
        $region39: #{tpu_custom_call.1} parent=35 // pred_region
          %s1859 = smul.u32 8, %s23
          %s1861 = ssub.s32 2048, 2048
          %1862 = vsyncadd %s1852, %s1861
          %s1863 = smul.addr %s1859, 2
          %s1864 = smul.addr %s22, 32
          %s1865 = sadd.s32 %s1863, %s1864
          %s1866 = smul.addr %s1865, 128
          %s1867 = scalar_lea.hbm %s4, %s1866
          %s1868 = sshll.u32 %s1855, 4
          %s1869 = int_to_ptr.vmem [resolvable:$true] %s1868
          %1874 = dma.vmem_to_hbm [thread:$0]  %s1869, 2048, %s1867, %s1852, 128, 128, 8
        $region40: #{tpu_custom_call.1} parent=35 // pred_fallthru
          _
      $region36: #{tpu_custom_call.1} parent=5 // pred_fallthru
        _
      %p1875 = scmp.le.s32.totalorder 2, %s13
      // Predicated region
      $region41: #{tpu_custom_call.1} parent=5 // pred_check
        %p1876 = pneg %p1875
      $region42: #{tpu_custom_call.1} parent=5 // pred_check_branch
        %1878 = sbr.rel (%p1876) target = $region44
      $region43: #{tpu_custom_call.1} parent=5 // pred_region
        %s1879 = ssub.s32 %s13, 2
        // Predicated region
        $region45: #{tpu_custom_call.1} parent=43 // pred_check
          %p1880 = pneg %p145
        $region46: #{tpu_custom_call.1} parent=43 // pred_check_branch
          %1882 = sbr.rel (%p1880) target = $region48
        $region47: #{tpu_custom_call.1} parent=43 // pred_region
          %s1883 = sand.u32 %s130, 1
          %s1884 = scalar_lea.sflag [#allocation3], %s1883
          %s1885 = sand.u32 %s130, 1
          %s1886 = smul.addr %s1885, 128
          %s1887 = scalar_lea.vmem [#allocation2], %s1886
          %1888 = dma.done %s1884, 2048
        $region48: #{tpu_custom_call.1} parent=43 // pred_fallthru
          _
      $region44: #{tpu_custom_call.1} parent=5 // pred_fallthru
        _
    $region6: #{tpu_custom_call.1} parent=1 // loop_footer
      %s17 = sadd.s32 1, %s13
    $region7: #{tpu_custom_call.1} parent=1 // loop_footer_branch
      %12 = sbr.rel target = $region3
    $region8: #{tpu_custom_call.1} parent=1 // loop_exit
      _
    %1889 = vsyncpa [#allocation3], 1
    %s1890 = scalar_lea.sflag [#allocation3], 1
    %1891 = vsyncpa %s1890, 1

</llo_original>
